<compile_context>
chip_gen: v7x
topology: tpu7x:2x2x1
jax: 0.10.0
libtpu: 0.0.40
codegen_flags: <defaults>
</compile_context>

<pallas_src>
import functools

import jax
import jax.numpy as jnp
import numpy as np
from jax.experimental import pallas as pl
from jax.experimental.pallas import tpu as pltpu


# ----------------------------- Pallas kernels ------------------------------


def _conv3x3_kernel(x_ref, mask_ref, scale_ref, shift_ref, w_ref,
                    o_ref, stats_ref, *, W, d, fuse_in_bn_relu,
                    accumulate_taps):
    """One lane-block (group of whole images):
       [fused BN+ReLU prologue] -> 3x3 dilated conv -> packed BN partial stats.

    x_ref:     (CinP, BLK)      activation block; BLK = n_block * H*W lanes
    mask_ref:  (9, 1, BLK)      {0,1} boundary mask per 3x3 tap (compute dtype)
    scale_ref: (CinP, 1)        BN scale for the *input* channels (prologue)
    shift_ref: (CinP, 1)        BN shift for the *input* channels (prologue)
    w_ref:     (CoutP, 9*CinP)  weights; column index = (ky*3 + kx)*CinP + ci
    o_ref:     (CoutP, BLK)     conv output (lane-dense)
    stats_ref: (1, CoutP, 2)    packed per-channel [sum, sum_sq] over BLK (f32)
    """
    BLK = x_ref.shape[-1]
    CinP = x_ref.shape[0]

    x = x_ref[...]                                       # compute dtype, no upcast
    if fuse_in_bn_relu:
        # Previous block's BatchNorm + ReLU applied on the VMEM-resident tile
        # (saves a full HBM write + read of the normalized activation).
        x = jnp.maximum(x * scale_ref[...] + shift_ref[...], 0)

    def tap(ky, kx):
        # Tap (ky,kx) needs the input at flat index p + ((ky-1)*W + (kx-1))*d.
        # A circular lane-roll of the whole image-concatenated tile provides
        # the shift; the precomputed mask zeroes out-of-image source pixels,
        # which are exactly the positions where the roll wraps rows or crosses
        # an image boundary inside the lane block.
        if ky == 1 and kx == 1:
            return x                                     # centre tap
        off = ((ky - 1) * W + (kx - 1)) * d
        rolled = pltpu.roll(x, shift=(-off) % BLK, axis=1)
        return rolled * mask_ref[ky * 3 + kx]            # (CinP, BLK)

    if accumulate_taps:
        # Production channel counts: never materialize the 9*Cin im2col;
        # 9 accumulating K=CinP matmuls into an f32 accumulator.
        out = jnp.zeros((w_ref.shape[0], BLK), jnp.float32)
        for ky in range(3):
            for kx in range(3):
                t = ky * 3 + kx
                out = out + jnp.dot(w_ref[:, t * CinP:(t + 1) * CinP],
                                    tap(ky, kx),
                                    preferred_element_type=jnp.float32)
    else:
        # Small channel counts: single MXU contraction
        # (CoutP, 9*CinP) @ (9*CinP, BLK) with f32 accumulation.
        col = jnp.concatenate(
            [tap(ky, kx) for ky in range(3) for kx in range(3)], axis=0)
        out = jnp.dot(w_ref[...], col, preferred_element_type=jnp.float32)

    o_ref[...] = out.astype(o_ref.dtype)
    # Packed partial BatchNorm statistics (reduced over lane blocks in the
    # wrapper) so the conv output never has to be re-read from HBM.
    s = jnp.sum(out, axis=1, keepdims=True)
    q = jnp.sum(out * out, axis=1, keepdims=True)
    stats_ref[0] = jnp.concatenate([s, q], axis=1)       # (CoutP, 2)


def _bn_relu_kernel(y_ref, scale_ref, shift_ref, o_ref):
    """Final affine BatchNorm (precomputed scale/shift) + ReLU, lane-dense."""
    o_ref[...] = jnp.maximum(y_ref[...] * scale_ref[...] + shift_ref[...],
                             0).astype(o_ref.dtype)


# --------------------------- pallas_call wrappers ---------------------------


def conv3x3_pallas(x, masks, scale, shift, w_mat, *, W, dilation, lane_block,
                   fuse_in_bn_relu, out_dtype):
    CinP, total = x.shape
    CoutP = w_mat.shape[0]
    NB = total // lane_block
    # For big Cin, switch to accumulating per-tap matmuls (no materialized col).
    accumulate_taps = (9 * CinP) >= 1152
    kernel = functools.partial(_conv3x3_kernel, W=W, d=dilation,
                               fuse_in_bn_relu=fuse_in_bn_relu,
                               accumulate_taps=accumulate_taps)
    return pl.pallas_call(
        kernel,
        out_shape=(
            jax.ShapeDtypeStruct((CoutP, total), out_dtype),
            jax.ShapeDtypeStruct((NB, CoutP, 2), jnp.float32),
        ),
        grid_spec=pltpu.PrefetchScalarGridSpec(
            num_scalar_prefetch=0,
            grid=(NB,),
            in_specs=[
                pl.BlockSpec((CinP, lane_block), lambda i: (0, i)),
                pl.BlockSpec((9, 1, lane_block), lambda i: (0, 0, 0)),
                pl.BlockSpec((CinP, 1), lambda i: (0, 0)),
                pl.BlockSpec((CinP, 1), lambda i: (0, 0)),
                pl.BlockSpec((CoutP, 9 * CinP), lambda i: (0, 0)),
            ],
            out_specs=(
                pl.BlockSpec((CoutP, lane_block), lambda i: (0, i)),
                pl.BlockSpec((1, CoutP, 2), lambda i: (i, 0, 0)),
            ),
        ),
        compiler_params=pltpu.CompilerParams(
            dimension_semantics=("parallel",)),
    )(x, masks, scale, shift, w_mat)


def bn_relu_pallas(y, scale, shift, *, lane_block, out_dtype):
    C, total = y.shape
    NB = total // lane_block
    return pl.pallas_call(
        _bn_relu_kernel,
        out_shape=jax.ShapeDtypeStruct((C, total), out_dtype),
        grid_spec=pltpu.PrefetchScalarGridSpec(
            num_scalar_prefetch=0,
            grid=(NB,),
            in_specs=[
                pl.BlockSpec((C, lane_block), lambda i: (0, i)),
                pl.BlockSpec((C, 1), lambda i: (0, 0)),
                pl.BlockSpec((C, 1), lambda i: (0, 0)),
            ],
            out_specs=pl.BlockSpec((C, lane_block), lambda i: (0, i)),
        ),
        compiler_params=pltpu.CompilerParams(
            dimension_semantics=("parallel",)),
    )(y, scale, shift)


# ----------------------------- Host-side helpers ----------------------------


def _round_up(x, m):
    return (x + m - 1) // m * m


def _tap_masks(H, W, d):
    """{0,1} mask per 3x3 tap marking in-image source pixels (flat H*W layout)."""
    HW = H * W
    h = np.arange(HW) // W
    w = np.arange(HW) % W
    m = np.zeros((9, 1, HW), np.float32)
    for ky in range(3):
        for kx in range(3):
            dy, dx = (ky - 1) * d, (kx - 1) * d
            m[ky * 3 + kx, 0] = ((h + dy >= 0) & (h + dy < H) &
                                 (w + dx >= 0) & (w + dx < W))
    return m


def _pack_weights(w_oihw, cin_p, cout_p, dtype):
    """OIHW -> (CoutP, 9*CinP); column index = (ky*3 + kx)*CinP + ci."""
    O, I, KH, KW = w_oihw.shape
    w = jnp.pad(w_oihw, ((0, cout_p - O), (0, cin_p - I), (0, 0), (0, 0)))
    return jnp.transpose(w, (0, 2, 3, 1)).reshape(
        cout_p, KH * KW * cin_p).astype(dtype)


@functools.partial(jax.jit,
                   static_argnames=("dilation", "compute_dtype",
                                    "max_lane_block"))
def double_conv(x_nchw, params, dilation=1, compute_dtype=jnp.float32,
                max_lane_block=2048):
    """Forward pass of DoubleConv.

    Input is NCHW; output is NCHW in `compute_dtype` (f32 by default) so a
    downstream Pallas stage could consume the bf16 activation directly.
    """
    eps = 1e-5
    N, Cin, H, W = x_nchw.shape
    Cout = params["w1"].shape[0]
    HW = H * W
    assert HW % 128 == 0, "flattened spatial axis must be lane-aligned (x128)"
    cin_p, cout_p = _round_up(Cin, 8), _round_up(Cout, 8)

    # Images per grid step: widest lane block (<= max_lane_block lanes) made of
    # whole images, so the per-step matmul covers n_blk*HW lane columns and the
    # weight push / MXU fill / per-step overhead is amortized.  At production N
    # this still yields many "parallel" grid steps (v7x 2-TC sharding).
    n_blk = 1
    for cand in range(min(N, max(1, max_lane_block // HW)), 0, -1):
        if N % cand == 0:
            n_blk = cand
            break
    lane_block = n_blk * HW

    # NCHW -> (C, N*HW): one transpose at the module boundary; every kernel
    # tile is then lane-dense with zero in-kernel layout changes.
    x = jnp.transpose(x_nchw, (1, 0, 2, 3)).reshape(Cin, N * HW)
    x = x.astype(compute_dtype)
    if cin_p != Cin:                       # sublane-align channels (tiny pad)
        x = jnp.pad(x, ((0, cin_p - Cin), (0, 0)))

    # Boundary masks, tiled to the per-step lane block, in compute dtype so the
    # bf16 path never upcasts the tap working set.
    masks = jnp.asarray(
        np.tile(_tap_masks(H, W, dilation), (1, 1, n_blk))).astype(compute_dtype)

    w1 = _pack_weights(params["w1"], cin_p, cout_p, compute_dtype)
    w2 = _pack_weights(params["w2"], cout_p, cout_p, compute_dtype)

    def bn_coeffs(stats, gamma, beta):
        # Training-mode BatchNorm2d: batch statistics over (N,H,W), biased var.
        cnt = jnp.float32(N * HW)
        tot = jnp.sum(stats, axis=0)                           # (CoutP, 2)
        mean = tot[:, 0] / cnt
        # Clamp: E[x^2]-mean^2 can go slightly negative from f32 cancellation.
        var = jnp.maximum(tot[:, 1] / cnt - mean * mean, 0.0)
        g = jnp.pad(gamma.astype(jnp.float32), (0, cout_p - Cout),
                    constant_values=1.0)
        b = jnp.pad(beta.astype(jnp.float32), (0, cout_p - Cout))
        scale = g * jax.lax.rsqrt(var + eps)
        shift = b - mean * scale
        return (scale.reshape(cout_p, 1).astype(compute_dtype),
                shift.reshape(cout_p, 1).astype(compute_dtype))

    ident_s = jnp.ones((cin_p, 1), compute_dtype)   # unused in conv1 prologue
    ident_b = jnp.zeros((cin_p, 1), compute_dtype)

    # conv1 (+ packed per-block BN statistics)
    y1, st1 = conv3x3_pallas(x, masks, ident_s, ident_b, w1, W=W,
                             dilation=dilation, lane_block=lane_block,
                             fuse_in_bn_relu=False, out_dtype=compute_dtype)
    sc1, sh1 = bn_coeffs(st1, params["g1"], params["b1"])

    # conv2 with BN1 + ReLU fused into its prologue (+ conv2 BN statistics)
    y2, st2 = conv3x3_pallas(y1, masks, sc1, sh1, w2, W=W,
                             dilation=dilation, lane_block=lane_block,
                             fuse_in_bn_relu=True, out_dtype=compute_dtype)
    sc2, sh2 = bn_coeffs(st2, params["g2"], params["b2"])

    # Final BN2 + ReLU: lane-dense elementwise pass, emitted in compute dtype
    # (halves the final HBM write in the bf16 path).
    out = bn_relu_pallas(y2, sc2, sh2, lane_block=lane_block,
                         out_dtype=compute_dtype)              # (CoutP, N*HW)
    if cout_p != Cout:
        out = out[:Cout]
    return jnp.transpose(out.reshape(Cout, N, H, W), (1, 0, 2, 3))


# ----------------------------- Pure-JAX reference ----------------------------


def double_conv_ref(x_nchw, params, dilation=1):
    eps = 1e-5
    d = dilation

    def conv(x, w):
        return jax.lax.conv_general_dilated(
            x, w, window_strides=(1, 1), padding=[(d, d), (d, d)],
            rhs_dilation=(d, d),
            dimension_numbers=("NCHW", "OIHW", "NCHW"))

    def bn_relu(y, g, b):
        mean = jnp.mean(y, axis=(0, 2, 3), keepdims=True)
        var = jnp.mean((y - mean) ** 2, axis=(0, 2, 3), keepdims=True)
        yn = (y - mean) / jnp.sqrt(var + eps)
        return jnp.maximum(
            yn * g.reshape(1, -1, 1, 1) + b.reshape(1, -1, 1, 1), 0.0)

    y = bn_relu(conv(x_nchw, params["w1"]), params["g1"], params["b1"])
    return bn_relu(conv(y, params["w2"]), params["g2"], params["b2"])


# ----------------------------------- Main ------------------------------------


if __name__ == "__main__":
    key = jax.random.PRNGKey(0)
    k_x, k_w1, k_w2, k_g1, k_b1, k_g2, k_b2 = jax.random.split(key, 7)

    N, Cin, Cout, H, W = 2, 4, 8, 16, 16
    x = jax.random.normal(k_x, (N, Cin, H, W), dtype=jnp.float32)
    params = {
        "w1": 0.1 * jax.random.normal(k_w1, (Cout, Cin, 3, 3), jnp.float32),
        "g1": 1.0 + 0.1 * jax.random.normal(k_g1, (Cout,), jnp.float32),
        "b1": 0.1 * jax.random.normal(k_b1, (Cout,), jnp.float32),
        "w2": 0.1 * jax.random.normal(k_w2, (Cout, Cout, 3, 3), jnp.float32),
        "g2": 1.0 + 0.1 * jax.random.normal(k_g2, (Cout,), jnp.float32),
        "b2": 0.1 * jax.random.normal(k_b2, (Cout,), jnp.float32),
    }

    # f32 path: strict check against a pure-JAX (lax.conv) reference, with and
    # without dilation.
    for dil in (1, 2):
        out = jax.block_until_ready(double_conv(x, params, dilation=dil))
        ref = double_conv_ref(x, params, dilation=dil)
        assert out.shape == (N, Cout, H, W)
        np.testing.assert_allclose(np.asarray(out), np.asarray(ref),
                                   rtol=1e-4, atol=1e-4)

    # bf16 path (bf16 taps / prologue / HBM, f32 accumulation + f32 BN stats):
    # looser check.
    out_bf16 = jax.block_until_ready(
        double_conv(x, params, dilation=1, compute_dtype=jnp.bfloat16))
    np.testing.assert_allclose(
        np.asarray(out_bf16.astype(jnp.float32)),
        np.asarray(double_conv_ref(x, params, dilation=1)),
        rtol=5e-2, atol=5e-2)

    print("KERNEL_OK")
</pallas_src>

<mosaic_0001>
module attributes {stable_mosaic.version = 11 : i64} {
  func.func @_conv3x3_kernel(%arg0: i32, %arg1: memref<8x512xf32, #tpu.memory_space<vmem>>, %arg2: memref<9x1x512xf32, #tpu.memory_space<vmem>>, %arg3: memref<8x1xf32, #tpu.memory_space<vmem>>, %arg4: memref<8x1xf32, #tpu.memory_space<vmem>>, %arg5: memref<8x72xf32, #tpu.memory_space<vmem>>, %arg6: memref<8x512xf32, #tpu.memory_space<vmem>>, %arg7: memref<1x8x2xf32, #tpu.memory_space<vmem>>) attributes {dimension_semantics = [#tpu.dimension_semantics<parallel>], iteration_bounds = array<i64: 1>, scalar_prefetch = 0 : i64, scratch_operands = 0 : i64, tpu.core_type = #tpu.core_type<tc>, window_params = [{transform_indices = @transform_0, window_bounds = array<i64: 8, 512>}, {pipeline_mode = #tpu.pipeline_mode<synchronous>, transform_indices = @transform_1, window_bounds = array<i64: 9, 1, 512>}, {pipeline_mode = #tpu.pipeline_mode<synchronous>, transform_indices = @transform_2, window_bounds = array<i64: 8, 1>}, {pipeline_mode = #tpu.pipeline_mode<synchronous>, transform_indices = @transform_3, window_bounds = array<i64: 8, 1>}, {pipeline_mode = #tpu.pipeline_mode<synchronous>, transform_indices = @transform_4, window_bounds = array<i64: 8, 72>}, {transform_indices = @transform_5, window_bounds = array<i64: 8, 512>}, {transform_indices = @transform_6, window_bounds = array<i64: 1, 8, 2>}]} {
    %c0 = arith.constant 0 : index
    %c0_0 = arith.constant 0 : index
    %0 = vector.load %arg1[%c0, %c0_0] : memref<8x512xf32, #tpu.memory_space<vmem>>, vector<8x512xf32>
    %c17_i32 = arith.constant 17 : i32
    %1 = tpu.dynamic_rotate %0 by %c17_i32 dim 1 : vector<8x512xf32>, i32 -> vector<8x512xf32>
    %c0_1 = arith.constant 0 : index
    %c0_2 = arith.constant 0 : index
    %c0_3 = arith.constant 0 : index
    %2 = vector.load %arg2[%c0_1, %c0_2, %c0_3] : memref<9x1x512xf32, #tpu.memory_space<vmem>>, vector<1x1x512xf32>
    %3 = vector.shape_cast %2 : vector<1x1x512xf32> to vector<1x512xf32>
    %4 = vector.broadcast %3 : vector<1x512xf32> to vector<8x512xf32>
    %5 = arith.mulf %1, %4 : vector<8x512xf32>
    %c16_i32 = arith.constant 16 : i32
    %6 = tpu.dynamic_rotate %0 by %c16_i32 dim 1 : vector<8x512xf32>, i32 -> vector<8x512xf32>
    %c1 = arith.constant 1 : index
    %c0_4 = arith.constant 0 : index
    %c0_5 = arith.constant 0 : index
    %7 = vector.load %arg2[%c1, %c0_4, %c0_5] : memref<9x1x512xf32, #tpu.memory_space<vmem>>, vector<1x1x512xf32>
    %8 = vector.shape_cast %7 : vector<1x1x512xf32> to vector<1x512xf32>
    %9 = vector.broadcast %8 : vector<1x512xf32> to vector<8x512xf32>
    %10 = arith.mulf %6, %9 : vector<8x512xf32>
    %c15_i32 = arith.constant 15 : i32
    %11 = tpu.dynamic_rotate %0 by %c15_i32 dim 1 : vector<8x512xf32>, i32 -> vector<8x512xf32>
    %c2 = arith.constant 2 : index
    %c0_6 = arith.constant 0 : index
    %c0_7 = arith.constant 0 : index
    %12 = vector.load %arg2[%c2, %c0_6, %c0_7] : memref<9x1x512xf32, #tpu.memory_space<vmem>>, vector<1x1x512xf32>
    %13 = vector.shape_cast %12 : vector<1x1x512xf32> to vector<1x512xf32>
    %14 = vector.broadcast %13 : vector<1x512xf32> to vector<8x512xf32>
    %15 = arith.mulf %11, %14 : vector<8x512xf32>
    %c1_i32 = arith.constant 1 : i32
    %16 = tpu.dynamic_rotate %0 by %c1_i32 dim 1 : vector<8x512xf32>, i32 -> vector<8x512xf32>
    %c3 = arith.constant 3 : index
    %c0_8 = arith.constant 0 : index
    %c0_9 = arith.constant 0 : index
    %17 = vector.load %arg2[%c3, %c0_8, %c0_9] : memref<9x1x512xf32, #tpu.memory_space<vmem>>, vector<1x1x512xf32>
    %18 = vector.shape_cast %17 : vector<1x1x512xf32> to vector<1x512xf32>
    %19 = vector.broadcast %18 : vector<1x512xf32> to vector<8x512xf32>
    %20 = arith.mulf %16, %19 : vector<8x512xf32>
    %c511_i32 = arith.constant 511 : i32
    %21 = tpu.dynamic_rotate %0 by %c511_i32 dim 1 : vector<8x512xf32>, i32 -> vector<8x512xf32>
    %c5 = arith.constant 5 : index
    %c0_10 = arith.constant 0 : index
    %c0_11 = arith.constant 0 : index
    %22 = vector.load %arg2[%c5, %c0_10, %c0_11] : memref<9x1x512xf32, #tpu.memory_space<vmem>>, vector<1x1x512xf32>
    %23 = vector.shape_cast %22 : vector<1x1x512xf32> to vector<1x512xf32>
    %24 = vector.broadcast %23 : vector<1x512xf32> to vector<8x512xf32>
    %25 = arith.mulf %21, %24 : vector<8x512xf32>
    %c497_i32 = arith.constant 497 : i32
    %26 = tpu.dynamic_rotate %0 by %c497_i32 dim 1 : vector<8x512xf32>, i32 -> vector<8x512xf32>
    %c6 = arith.constant 6 : index
    %c0_12 = arith.constant 0 : index
    %c0_13 = arith.constant 0 : index
    %27 = vector.load %arg2[%c6, %c0_12, %c0_13] : memref<9x1x512xf32, #tpu.memory_space<vmem>>, vector<1x1x512xf32>
    %28 = vector.shape_cast %27 : vector<1x1x512xf32> to vector<1x512xf32>
    %29 = vector.broadcast %28 : vector<1x512xf32> to vector<8x512xf32>
    %30 = arith.mulf %26, %29 : vector<8x512xf32>
    %c496_i32 = arith.constant 496 : i32
    %31 = tpu.dynamic_rotate %0 by %c496_i32 dim 1 : vector<8x512xf32>, i32 -> vector<8x512xf32>
    %c7 = arith.constant 7 : index
    %c0_14 = arith.constant 0 : index
    %c0_15 = arith.constant 0 : index
    %32 = vector.load %arg2[%c7, %c0_14, %c0_15] : memref<9x1x512xf32, #tpu.memory_space<vmem>>, vector<1x1x512xf32>
    %33 = vector.shape_cast %32 : vector<1x1x512xf32> to vector<1x512xf32>
    %34 = vector.broadcast %33 : vector<1x512xf32> to vector<8x512xf32>
    %35 = arith.mulf %31, %34 : vector<8x512xf32>
    %c495_i32 = arith.constant 495 : i32
    %36 = tpu.dynamic_rotate %0 by %c495_i32 dim 1 : vector<8x512xf32>, i32 -> vector<8x512xf32>
    %c8 = arith.constant 8 : index
    %c0_16 = arith.constant 0 : index
    %c0_17 = arith.constant 0 : index
    %37 = vector.load %arg2[%c8, %c0_16, %c0_17] : memref<9x1x512xf32, #tpu.memory_space<vmem>>, vector<1x1x512xf32>
    %38 = vector.shape_cast %37 : vector<1x1x512xf32> to vector<1x512xf32>
    %39 = vector.broadcast %38 : vector<1x512xf32> to vector<8x512xf32>
    %40 = arith.mulf %36, %39 : vector<8x512xf32>
    %41 = tpu.concatenate %5, %10, %15, %20, %0, %25, %30, %35, %40 in 0 : vector<8x512xf32>, vector<8x512xf32>, vector<8x512xf32>, vector<8x512xf32>, vector<8x512xf32>, vector<8x512xf32>, vector<8x512xf32>, vector<8x512xf32>, vector<8x512xf32> -> vector<72x512xf32>
    %c0_18 = arith.constant 0 : index
    %c0_19 = arith.constant 0 : index
    %42 = vector.load %arg5[%c0_18, %c0_19] : memref<8x72xf32, #tpu.memory_space<vmem>>, vector<8x72xf32>
    %cst = arith.constant dense<0.000000e+00> : vector<8x512xf32>
    %43 = tpu.matmul %42, %41, %cst {dimension_numbers = #tpu.dot_dimension_numbers<[1], [0], [0], [1], [0, 0, 1, 1], [], []>} : vector<8x72xf32>, vector<72x512xf32>, vector<8x512xf32> -> vector<8x512xf32>
    %c0_20 = arith.constant 0 : index
    %c0_21 = arith.constant 0 : index
    %44 = vector.load %arg6[%c0_20, %c0_21] : memref<8x512xf32, #tpu.memory_space<vmem>>, vector<8x512xf32>
    tpu.vector_store %arg6[%c0_20, %c0_21], %43 {strides = array<i32>} : memref<8x512xf32, #tpu.memory_space<vmem>>, vector<8x512xf32>,
    %cst_22 = arith.constant dense<0.000000e+00> : vector<8xf32>
    %45 = vector.multi_reduction <add>, %43, %cst_22 [1] : vector<8x512xf32> to vector<8xf32>
    %46 = vector.shape_cast %45 : vector<8xf32> to vector<8x1xf32>
    %47 = arith.mulf %43, %43 : vector<8x512xf32>
    %cst_23 = arith.constant dense<0.000000e+00> : vector<8xf32>
    %48 = vector.multi_reduction <add>, %47, %cst_23 [1] : vector<8x512xf32> to vector<8xf32>
    %49 = vector.shape_cast %48 : vector<8xf32> to vector<8x1xf32>
    %50 = tpu.concatenate %46, %49 in 1 : vector<8x1xf32>, vector<8x1xf32> -> vector<8x2xf32>
    %c0_24 = arith.constant 0 : index
    %c0_25 = arith.constant 0 : index
    %c0_26 = arith.constant 0 : index
    %51 = vector.load %arg7[%c0_24, %c0_25, %c0_26] : memref<1x8x2xf32, #tpu.memory_space<vmem>>, vector<1x8x2xf32>
    %52 = vector.shape_cast %51 : vector<1x8x2xf32> to vector<8x2xf32>
    %53 = vector.shape_cast %50 : vector<8x2xf32> to vector<1x8x2xf32>
    tpu.vector_store %arg7[%c0_24, %c0_25, %c0_26], %53 {strides = array<i32>} : memref<1x8x2xf32, #tpu.memory_space<vmem>>, vector<1x8x2xf32>,
    return
  }
  func.func @transform_0(%arg0: i32) -> (i32, i32) {
    %c0_i32 = arith.constant 0 : i32
    %c0_i32_0 = arith.constant 0 : i32
    return %c0_i32, %arg0 : i32, i32
  }
  func.func @transform_1(%arg0: i32) -> (i32, i32, i32) {
    %c0_i32 = arith.constant 0 : i32
    %c0_i32_0 = arith.constant 0 : i32
    %c0_i32_1 = arith.constant 0 : i32
    %c0_i32_2 = arith.constant 0 : i32
    return %c0_i32, %c0_i32_0, %c0_i32_1 : i32, i32, i32
  }
  func.func @transform_2(%arg0: i32) -> (i32, i32) {
    %c0_i32 = arith.constant 0 : i32
    %c0_i32_0 = arith.constant 0 : i32
    %c0_i32_1 = arith.constant 0 : i32
    return %c0_i32, %c0_i32_0 : i32, i32
  }
  func.func @transform_3(%arg0: i32) -> (i32, i32) {
    %c0_i32 = arith.constant 0 : i32
    %c0_i32_0 = arith.constant 0 : i32
    %c0_i32_1 = arith.constant 0 : i32
    return %c0_i32, %c0_i32_0 : i32, i32
  }
  func.func @transform_4(%arg0: i32) -> (i32, i32) {
    %c0_i32 = arith.constant 0 : i32
    %c0_i32_0 = arith.constant 0 : i32
    %c0_i32_1 = arith.constant 0 : i32
    return %c0_i32, %c0_i32_0 : i32, i32
  }
  func.func @transform_5(%arg0: i32) -> (i32, i32) {
    %c0_i32 = arith.constant 0 : i32
    %c0_i32_0 = arith.constant 0 : i32
    return %c0_i32, %arg0 : i32, i32
  }
  func.func @transform_6(%arg0: i32) -> (i32, i32, i32) {
    %c0_i32 = arith.constant 0 : i32
    %c0_i32_0 = arith.constant 0 : i32
    %c0_i32_1 = arith.constant 0 : i32
    return %arg0, %c0_i32, %c0_i32_0 : i32, i32, i32
  }
}

module attributes {stable_mosaic.version = 11 : i64} {
  func.func @_conv3x3_kernel(%arg0: i32, %arg1: memref<8x512xf32, #tpu.memory_space<vmem>>, %arg2: memref<9x1x512xf32, #tpu.memory_space<vmem>>, %arg3: memref<8x1xf32, #tpu.memory_space<vmem>>, %arg4: memref<8x1xf32, #tpu.memory_space<vmem>>, %arg5: memref<8x72xf32, #tpu.memory_space<vmem>>, %arg6: memref<8x512xf32, #tpu.memory_space<vmem>>, %arg7: memref<1x8x2xf32, #tpu.memory_space<vmem>>) attributes {dimension_semantics = [#tpu.dimension_semantics<parallel>], iteration_bounds = array<i64: 1>, scalar_prefetch = 0 : i64, scratch_operands = 0 : i64, tpu.core_type = #tpu.core_type<tc>, window_params = [{transform_indices = @transform_0, window_bounds = array<i64: 8, 512>}, {pipeline_mode = #tpu.pipeline_mode<synchronous>, transform_indices = @transform_1, window_bounds = array<i64: 9, 1, 512>}, {pipeline_mode = #tpu.pipeline_mode<synchronous>, transform_indices = @transform_2, window_bounds = array<i64: 8, 1>}, {pipeline_mode = #tpu.pipeline_mode<synchronous>, transform_indices = @transform_3, window_bounds = array<i64: 8, 1>}, {pipeline_mode = #tpu.pipeline_mode<synchronous>, transform_indices = @transform_4, window_bounds = array<i64: 8, 72>}, {transform_indices = @transform_5, window_bounds = array<i64: 8, 512>}, {transform_indices = @transform_6, window_bounds = array<i64: 1, 8, 2>}]} {
    %c0 = arith.constant 0 : index
    %c0_0 = arith.constant 0 : index
    %0 = vector.load %arg1[%c0, %c0_0] : memref<8x512xf32, #tpu.memory_space<vmem>>, vector<8x512xf32>
    %c0_1 = arith.constant 0 : index
    %c0_2 = arith.constant 0 : index
    %1 = vector.load %arg3[%c0_1, %c0_2] : memref<8x1xf32, #tpu.memory_space<vmem>>, vector<8x1xf32>
    %2 = vector.broadcast %1 : vector<8x1xf32> to vector<8x512xf32>
    %3 = arith.mulf %0, %2 : vector<8x512xf32>
    %c0_3 = arith.constant 0 : index
    %c0_4 = arith.constant 0 : index
    %4 = vector.load %arg4[%c0_3, %c0_4] : memref<8x1xf32, #tpu.memory_space<vmem>>, vector<8x1xf32>
    %5 = vector.broadcast %4 : vector<8x1xf32> to vector<8x512xf32>
    %6 = arith.addf %3, %5 : vector<8x512xf32>
    %cst = arith.constant 0.000000e+00 : f32
    %7 = vector.broadcast %cst : f32 to vector<8x512xf32>
    %8 = arith.maximumf %6, %7 : vector<8x512xf32>
    %c17_i32 = arith.constant 17 : i32
    %9 = tpu.dynamic_rotate %8 by %c17_i32 dim 1 : vector<8x512xf32>, i32 -> vector<8x512xf32>
    %c0_5 = arith.constant 0 : index
    %c0_6 = arith.constant 0 : index
    %c0_7 = arith.constant 0 : index
    %10 = vector.load %arg2[%c0_5, %c0_6, %c0_7] : memref<9x1x512xf32, #tpu.memory_space<vmem>>, vector<1x1x512xf32>
    %11 = vector.shape_cast %10 : vector<1x1x512xf32> to vector<1x512xf32>
    %12 = vector.broadcast %11 : vector<1x512xf32> to vector<8x512xf32>
    %13 = arith.mulf %9, %12 : vector<8x512xf32>
    %c16_i32 = arith.constant 16 : i32
    %14 = tpu.dynamic_rotate %8 by %c16_i32 dim 1 : vector<8x512xf32>, i32 -> vector<8x512xf32>
    %c1 = arith.constant 1 : index
    %c0_8 = arith.constant 0 : index
    %c0_9 = arith.constant 0 : index
    %15 = vector.load %arg2[%c1, %c0_8, %c0_9] : memref<9x1x512xf32, #tpu.memory_space<vmem>>, vector<1x1x512xf32>
    %16 = vector.shape_cast %15 : vector<1x1x512xf32> to vector<1x512xf32>
    %17 = vector.broadcast %16 : vector<1x512xf32> to vector<8x512xf32>
    %18 = arith.mulf %14, %17 : vector<8x512xf32>
    %c15_i32 = arith.constant 15 : i32
    %19 = tpu.dynamic_rotate %8 by %c15_i32 dim 1 : vector<8x512xf32>, i32 -> vector<8x512xf32>
    %c2 = arith.constant 2 : index
    %c0_10 = arith.constant 0 : index
    %c0_11 = arith.constant 0 : index
    %20 = vector.load %arg2[%c2, %c0_10, %c0_11] : memref<9x1x512xf32, #tpu.memory_space<vmem>>, vector<1x1x512xf32>
    %21 = vector.shape_cast %20 : vector<1x1x512xf32> to vector<1x512xf32>
    %22 = vector.broadcast %21 : vector<1x512xf32> to vector<8x512xf32>
    %23 = arith.mulf %19, %22 : vector<8x512xf32>
    %c1_i32 = arith.constant 1 : i32
    %24 = tpu.dynamic_rotate %8 by %c1_i32 dim 1 : vector<8x512xf32>, i32 -> vector<8x512xf32>
    %c3 = arith.constant 3 : index
    %c0_12 = arith.constant 0 : index
    %c0_13 = arith.constant 0 : index
    %25 = vector.load %arg2[%c3, %c0_12, %c0_13] : memref<9x1x512xf32, #tpu.memory_space<vmem>>, vector<1x1x512xf32>
    %26 = vector.shape_cast %25 : vector<1x1x512xf32> to vector<1x512xf32>
    %27 = vector.broadcast %26 : vector<1x512xf32> to vector<8x512xf32>
    %28 = arith.mulf %24, %27 : vector<8x512xf32>
    %c511_i32 = arith.constant 511 : i32
    %29 = tpu.dynamic_rotate %8 by %c511_i32 dim 1 : vector<8x512xf32>, i32 -> vector<8x512xf32>
    %c5 = arith.constant 5 : index
    %c0_14 = arith.constant 0 : index
    %c0_15 = arith.constant 0 : index
    %30 = vector.load %arg2[%c5, %c0_14, %c0_15] : memref<9x1x512xf32, #tpu.memory_space<vmem>>, vector<1x1x512xf32>
    %31 = vector.shape_cast %30 : vector<1x1x512xf32> to vector<1x512xf32>
    %32 = vector.broadcast %31 : vector<1x512xf32> to vector<8x512xf32>
    %33 = arith.mulf %29, %32 : vector<8x512xf32>
    %c497_i32 = arith.constant 497 : i32
    %34 = tpu.dynamic_rotate %8 by %c497_i32 dim 1 : vector<8x512xf32>, i32 -> vector<8x512xf32>
    %c6 = arith.constant 6 : index
    %c0_16 = arith.constant 0 : index
    %c0_17 = arith.constant 0 : index
    %35 = vector.load %arg2[%c6, %c0_16, %c0_17] : memref<9x1x512xf32, #tpu.memory_space<vmem>>, vector<1x1x512xf32>
    %36 = vector.shape_cast %35 : vector<1x1x512xf32> to vector<1x512xf32>
    %37 = vector.broadcast %36 : vector<1x512xf32> to vector<8x512xf32>
    %38 = arith.mulf %34, %37 : vector<8x512xf32>
    %c496_i32 = arith.constant 496 : i32
    %39 = tpu.dynamic_rotate %8 by %c496_i32 dim 1 : vector<8x512xf32>, i32 -> vector<8x512xf32>
    %c7 = arith.constant 7 : index
    %c0_18 = arith.constant 0 : index
    %c0_19 = arith.constant 0 : index
    %40 = vector.load %arg2[%c7, %c0_18, %c0_19] : memref<9x1x512xf32, #tpu.memory_space<vmem>>, vector<1x1x512xf32>
    %41 = vector.shape_cast %40 : vector<1x1x512xf32> to vector<1x512xf32>
    %42 = vector.broadcast %41 : vector<1x512xf32> to vector<8x512xf32>
    %43 = arith.mulf %39, %42 : vector<8x512xf32>
    %c495_i32 = arith.constant 495 : i32
    %44 = tpu.dynamic_rotate %8 by %c495_i32 dim 1 : vector<8x512xf32>, i32 -> vector<8x512xf32>
    %c8 = arith.constant 8 : index
    %c0_20 = arith.constant 0 : index
    %c0_21 = arith.constant 0 : index
    %45 = vector.load %arg2[%c8, %c0_20, %c0_21] : memref<9x1x512xf32, #tpu.memory_space<vmem>>, vector<1x1x512xf32>
    %46 = vector.shape_cast %45 : vector<1x1x512xf32> to vector<1x512xf32>
    %47 = vector.broadcast %46 : vector<1x512xf32> to vector<8x512xf32>
    %48 = arith.mulf %44, %47 : vector<8x512xf32>
    %49 = tpu.concatenate %13, %18, %23, %28, %8, %33, %38, %43, %48 in 0 : vector<8x512xf32>, vector<8x512xf32>, vector<8x512xf32>, vector<8x512xf32>, vector<8x512xf32>, vector<8x512xf32>, vector<8x512xf32>, vector<8x512xf32>, vector<8x512xf32> -> vector<72x512xf32>
    %c0_22 = arith.constant 0 : index
    %c0_23 = arith.constant 0 : index
    %50 = vector.load %arg5[%c0_22, %c0_23] : memref<8x72xf32, #tpu.memory_space<vmem>>, vector<8x72xf32>
    %cst_24 = arith.constant dense<0.000000e+00> : vector<8x512xf32>
    %51 = tpu.matmul %50, %49, %cst_24 {dimension_numbers = #tpu.dot_dimension_numbers<[1], [0], [0], [1], [0, 0, 1, 1], [], []>} : vector<8x72xf32>, vector<72x512xf32>, vector<8x512xf32> -> vector<8x512xf32>
    %c0_25 = arith.constant 0 : index
    %c0_26 = arith.constant 0 : index
    %52 = vector.load %arg6[%c0_25, %c0_26] : memref<8x512xf32, #tpu.memory_space<vmem>>, vector<8x512xf32>
    tpu.vector_store %arg6[%c0_25, %c0_26], %51 {strides = array<i32>} : memref<8x512xf32, #tpu.memory_space<vmem>>, vector<8x512xf32>,
    %cst_27 = arith.constant dense<0.000000e+00> : vector<8xf32>
    %53 = vector.multi_reduction <add>, %51, %cst_27 [1] : vector<8x512xf32> to vector<8xf32>
    %54 = vector.shape_cast %53 : vector<8xf32> to vector<8x1xf32>
    %55 = arith.mulf %51, %51 : vector<8x512xf32>
    %cst_28 = arith.constant dense<0.000000e+00> : vector<8xf32>
    %56 = vector.multi_reduction <add>, %55, %cst_28 [1] : vector<8x512xf32> to vector<8xf32>
    %57 = vector.shape_cast %56 : vector<8xf32> to vector<8x1xf32>
    %58 = tpu.concatenate %54, %57 in 1 : vector<8x1xf32>, vector<8x1xf32> -> vector<8x2xf32>
    %c0_29 = arith.constant 0 : index
    %c0_30 = arith.constant 0 : index
    %c0_31 = arith.constant 0 : index
    %59 = vector.load %arg7[%c0_29, %c0_30, %c0_31] : memref<1x8x2xf32, #tpu.memory_space<vmem>>, vector<1x8x2xf32>
    %60 = vector.shape_cast %59 : vector<1x8x2xf32> to vector<8x2xf32>
    %61 = vector.shape_cast %58 : vector<8x2xf32> to vector<1x8x2xf32>
    tpu.vector_store %arg7[%c0_29, %c0_30, %c0_31], %61 {strides = array<i32>} : memref<1x8x2xf32, #tpu.memory_space<vmem>>, vector<1x8x2xf32>,
    return
  }
  func.func @transform_0(%arg0: i32) -> (i32, i32) {
    %c0_i32 = arith.constant 0 : i32
    %c0_i32_0 = arith.constant 0 : i32
    return %c0_i32, %arg0 : i32, i32
  }
  func.func @transform_1(%arg0: i32) -> (i32, i32, i32) {
    %c0_i32 = arith.constant 0 : i32
    %c0_i32_0 = arith.constant 0 : i32
    %c0_i32_1 = arith.constant 0 : i32
    %c0_i32_2 = arith.constant 0 : i32
    return %c0_i32, %c0_i32_0, %c0_i32_1 : i32, i32, i32
  }
  func.func @transform_2(%arg0: i32) -> (i32, i32) {
    %c0_i32 = arith.constant 0 : i32
    %c0_i32_0 = arith.constant 0 : i32
    %c0_i32_1 = arith.constant 0 : i32
    return %c0_i32, %c0_i32_0 : i32, i32
  }
  func.func @transform_3(%arg0: i32) -> (i32, i32) {
    %c0_i32 = arith.constant 0 : i32
    %c0_i32_0 = arith.constant 0 : i32
    %c0_i32_1 = arith.constant 0 : i32
    return %c0_i32, %c0_i32_0 : i32, i32
  }
  func.func @transform_4(%arg0: i32) -> (i32, i32) {
    %c0_i32 = arith.constant 0 : i32
    %c0_i32_0 = arith.constant 0 : i32
    %c0_i32_1 = arith.constant 0 : i32
    return %c0_i32, %c0_i32_0 : i32, i32
  }
  func.func @transform_5(%arg0: i32) -> (i32, i32) {
    %c0_i32 = arith.constant 0 : i32
    %c0_i32_0 = arith.constant 0 : i32
    return %c0_i32, %arg0 : i32, i32
  }
  func.func @transform_6(%arg0: i32) -> (i32, i32, i32) {
    %c0_i32 = arith.constant 0 : i32
    %c0_i32_0 = arith.constant 0 : i32
    %c0_i32_1 = arith.constant 0 : i32
    return %arg0, %c0_i32, %c0_i32_0 : i32, i32, i32
  }
}

module attributes {stable_mosaic.version = 11 : i64} {
  func.func @_bn_relu_kernel(%arg0: i32, %arg1: memref<8x512xf32, #tpu.memory_space<vmem>>, %arg2: memref<8x1xf32, #tpu.memory_space<vmem>>, %arg3: memref<8x1xf32, #tpu.memory_space<vmem>>, %arg4: memref<8x512xf32, #tpu.memory_space<vmem>>) attributes {dimension_semantics = [#tpu.dimension_semantics<parallel>], iteration_bounds = array<i64: 1>, scalar_prefetch = 0 : i64, scratch_operands = 0 : i64, tpu.core_type = #tpu.core_type<tc>, window_params = [{transform_indices = @transform_0, window_bounds = array<i64: 8, 512>}, {pipeline_mode = #tpu.pipeline_mode<synchronous>, transform_indices = @transform_1, window_bounds = array<i64: 8, 1>}, {pipeline_mode = #tpu.pipeline_mode<synchronous>, transform_indices = @transform_2, window_bounds = array<i64: 8, 1>}, {transform_indices = @transform_3, window_bounds = array<i64: 8, 512>}]} {
    %c0 = arith.constant 0 : index
    %c0_0 = arith.constant 0 : index
    %0 = vector.load %arg1[%c0, %c0_0] : memref<8x512xf32, #tpu.memory_space<vmem>>, vector<8x512xf32>
    %c0_1 = arith.constant 0 : index
    %c0_2 = arith.constant 0 : index
    %1 = vector.load %arg2[%c0_1, %c0_2] : memref<8x1xf32, #tpu.memory_space<vmem>>, vector<8x1xf32>
    %2 = vector.broadcast %1 : vector<8x1xf32> to vector<8x512xf32>
    %3 = arith.mulf %0, %2 : vector<8x512xf32>
    %c0_3 = arith.constant 0 : index
    %c0_4 = arith.constant 0 : index
    %4 = vector.load %arg3[%c0_3, %c0_4] : memref<8x1xf32, #tpu.memory_space<vmem>>, vector<8x1xf32>
    %5 = vector.broadcast %4 : vector<8x1xf32> to vector<8x512xf32>
    %6 = arith.addf %3, %5 : vector<8x512xf32>
    %cst = arith.constant 0.000000e+00 : f32
    %7 = vector.broadcast %cst : f32 to vector<8x512xf32>
    %8 = arith.maximumf %6, %7 : vector<8x512xf32>
    %c0_5 = arith.constant 0 : index
    %c0_6 = arith.constant 0 : index
    %9 = vector.load %arg4[%c0_5, %c0_6] : memref<8x512xf32, #tpu.memory_space<vmem>>, vector<8x512xf32>
    tpu.vector_store %arg4[%c0_5, %c0_6], %8 {strides = array<i32>} : memref<8x512xf32, #tpu.memory_space<vmem>>, vector<8x512xf32>,
    return
  }
  func.func @transform_0(%arg0: i32) -> (i32, i32) {
    %c0_i32 = arith.constant 0 : i32
    %c0_i32_0 = arith.constant 0 : i32
    return %c0_i32, %arg0 : i32, i32
  }
  func.func @transform_1(%arg0: i32) -> (i32, i32) {
    %c0_i32 = arith.constant 0 : i32
    %c0_i32_0 = arith.constant 0 : i32
    %c0_i32_1 = arith.constant 0 : i32
    return %c0_i32, %c0_i32_0 : i32, i32
  }
  func.func @transform_2(%arg0: i32) -> (i32, i32) {
    %c0_i32 = arith.constant 0 : i32
    %c0_i32_0 = arith.constant 0 : i32
    %c0_i32_1 = arith.constant 0 : i32
    return %c0_i32, %c0_i32_0 : i32, i32
  }
  func.func @transform_3(%arg0: i32) -> (i32, i32) {
    %c0_i32 = arith.constant 0 : i32
    %c0_i32_0 = arith.constant 0 : i32
    return %c0_i32, %arg0 : i32, i32
  }
}

</mosaic_0001>

<llo_original>
// kernel: double_conv.5
$region0: #{double_conv.5}
  #allocation0 [shape = 'u32[]', space=smem, size = 0x4, offset = 0x4, fixed_abs, tag = 'smem constant byte address 0x4 - core index']
  #allocation1 [shape = 'u32[144,128]{1,0:T(1,128)}', space=vmem, size = 0x12000, scoped, tag = 'internal scratch']
  %s0 = inlined_call_operand.vmem [shape: f32[8,512], index: 0, kind: input, shape index: {}]
  %s1 = inlined_call_operand.vmem [shape: f32[8,1], index: 1, kind: input, shape index: {}]
  %s2 = inlined_call_operand.vmem [shape: f32[8,1], index: 2, kind: input, shape index: {}]
  %s3 = inlined_call_operand.vmem [shape: f32[8,512], index: 3, kind: output, shape index: {}]
  %s4 = sld [smem:[#allocation0]]
  $region22: #{double_conv.5} parent=0
    _
  %s6 = ssub.s32 1, %s4
  %s7 = scalar_select 0, %s6, %s4
  // Predicated region
  $region2: #{double_conv.5} parent=0 // pred_check
    _
  $region3: #{double_conv.5} parent=0 // pred_check_branch
    %9 = sbr.rel (0) target = $region5
  $region4: #{double_conv.5} parent=0 // pred_region
    _
  $region5: #{double_conv.5} parent=0 // pred_fallthru
    _
  // Predicated region
  $region6: #{double_conv.5} parent=0 // pred_check
    _
  $region7: #{double_conv.5} parent=0 // pred_check_branch
    %11 = sbr.rel (0) target = $region9
  $region8: #{double_conv.5} parent=0 // pred_region
    _
  $region9: #{double_conv.5} parent=0 // pred_fallthru
    _
  // Predicated region
  $region10: #{double_conv.5} parent=0 // pred_check
    _
  $region11: #{double_conv.5} parent=0 // pred_check_branch
    %13 = sbr.rel (0) target = $region13
  $region12: #{double_conv.5} parent=0 // pred_region
    _
  $region13: #{double_conv.5} parent=0 // pred_fallthru
    _
  %v14 = vld [vmem:[%s0] sm:$0xff]
  %v15 = vld [vmem:[%s0 + $0x8] sm:$0xff]
  %v16 = vld [vmem:[%s0 + $0x10] sm:$0xff]
  %v17 = vld [vmem:[%s0 + $0x18] sm:$0xff]
  %v18 = vld [vmem:[%s1] sm:$0xff]
  %20 = vset.pattern.permute.xlu0 0
  %21 = vperm.xlu0 %20, %v18
  %v22 = vpop.permute.xlu0 %21
  %v24 = vmul.f32 %v14, %v22
  %v25 = vmul.f32 %v15, %v22
  %v26 = vmul.f32 %v16, %v22
  %v27 = vmul.f32 %v17, %v22
  %v28 = vld [vmem:[%s2] sm:$0xff]
  %30 = vset.pattern.permute.xlu0 0
  %31 = vperm.xlu0 %30, %v28
  %v32 = vpop.permute.xlu0 %31
  %v34 = vadd.f32 %v24, %v32
  %v35 = vadd.f32 %v25, %v32
  %v36 = vadd.f32 %v26, %v32
  %v37 = vadd.f32 %v27, %v32
  %v38 = vmax.f32 %v34, 0.0
  %v39 = vmax.f32 %v35, 0.0
  %v40 = vmax.f32 %v36, 0.0
  %v41 = vmax.f32 %v37, 0.0
  %42 = vst [vmem:[%s3] sm:$0xff] %v38
  %43 = vst [vmem:[%s3 + $0x8] sm:$0xff] %v39
  %44 = vst [vmem:[%s3 + $0x10] sm:$0xff] %v40
  %45 = vst [vmem:[%s3 + $0x18] sm:$0xff] %v41
  // Predicated region
  $region14: #{double_conv.5} parent=0 // pred_check
    _
  $region15: #{double_conv.5} parent=0 // pred_check_branch
    %47 = sbr.rel (0) target = $region17
  $region16: #{double_conv.5} parent=0 // pred_region
    _
  $region17: #{double_conv.5} parent=0 // pred_fallthru
    _
  // Predicated region
  $region18: #{double_conv.5} parent=0 // pred_check
    _
  $region19: #{double_conv.5} parent=0 // pred_check_branch
    %49 = sbr.rel (0) target = $region21
  $region20: #{double_conv.5} parent=0 // pred_region
    _
  $region21: #{double_conv.5} parent=0 // pred_fallthru
    _

// kernel: double_conv.4
$region0: #{double_conv.4}
  #allocation0 [shape = 'u32[]', space=smem, size = 0x4, offset = 0x4, fixed_abs, tag = 'smem constant byte address 0x4 - core index']
  #allocation1 [shape = 'u32[144,128]{1,0:T(1,128)}', space=vmem, size = 0x12000, scoped, tag = 'internal scratch']
  %s0 = inlined_call_operand.vmem [shape: f32[8,512], index: 0, kind: input, shape index: {}]
  %s1 = inlined_call_operand.vmem [shape: f32[9,1,512], index: 1, kind: input, shape index: {}]
  %s2 = inlined_call_operand.vmem [shape: f32[8,1], index: 2, kind: input, shape index: {}]
  %s3 = inlined_call_operand.vmem [shape: f32[8,1], index: 3, kind: input, shape index: {}]
  %s4 = inlined_call_operand.vmem [shape: f32[8,72], index: 4, kind: input, shape index: {}]
  %s5 = inlined_call_operand.vmem [shape: f32[8,512], index: 5, kind: output, shape index: {0}]
  %s6 = inlined_call_operand.vmem [shape: f32[1,8,2], index: 6, kind: output, shape index: {1}]
  %7 = xla_tuple %s5, %s6
  %s8 = sld [smem:[#allocation0]]
  $region38: #{double_conv.4} parent=0
    _
  %s10 = ssub.s32 1, %s8
  %s11 = scalar_select 0, %s10, %s8
  // Predicated region
  $region2: #{double_conv.4} parent=0 // pred_check
    _
  $region3: #{double_conv.4} parent=0 // pred_check_branch
    %13 = sbr.rel (0) target = $region5
  $region4: #{double_conv.4} parent=0 // pred_region
    _
  $region5: #{double_conv.4} parent=0 // pred_fallthru
    _
  // Predicated region
  $region6: #{double_conv.4} parent=0 // pred_check
    _
  $region7: #{double_conv.4} parent=0 // pred_check_branch
    %15 = sbr.rel (0) target = $region9
  $region8: #{double_conv.4} parent=0 // pred_region
    _
  $region9: #{double_conv.4} parent=0 // pred_fallthru
    _
  // Predicated region
  $region10: #{double_conv.4} parent=0 // pred_check
    _
  $region11: #{double_conv.4} parent=0 // pred_check_branch
    %17 = sbr.rel (0) target = $region13
  $region12: #{double_conv.4} parent=0 // pred_region
    _
  $region13: #{double_conv.4} parent=0 // pred_fallthru
    _
  // Predicated region
  $region14: #{double_conv.4} parent=0 // pred_check
    _
  $region15: #{double_conv.4} parent=0 // pred_check_branch
    %19 = sbr.rel (0) target = $region17
  $region16: #{double_conv.4} parent=0 // pred_region
    _
  $region17: #{double_conv.4} parent=0 // pred_fallthru
    _
  // Predicated region
  $region18: #{double_conv.4} parent=0 // pred_check
    _
  $region19: #{double_conv.4} parent=0 // pred_check_branch
    %21 = sbr.rel (0) target = $region21
  $region20: #{double_conv.4} parent=0 // pred_region
    _
  $region21: #{double_conv.4} parent=0 // pred_fallthru
    _
  %v22 = vld [vmem:[%s0] sm:$0xff]
  %v23 = vld [vmem:[%s0 + $0x8] sm:$0xff]
  %v24 = vld [vmem:[%s0 + $0x10] sm:$0xff]
  %v25 = vld [vmem:[%s0 + $0x18] sm:$0xff]
  %v26 = vld [vmem:[%s2] sm:$0xff]
  %28 = vset.pattern.permute.xlu0 0
  %29 = vperm.xlu0 %28, %v26
  %v30 = vpop.permute.xlu0 %29
  %v32 = vmul.f32 %v22, %v30
  %v33 = vmul.f32 %v23, %v30
  %v34 = vmul.f32 %v24, %v30
  %v35 = vmul.f32 %v25, %v30
  %v36 = vld [vmem:[%s3] sm:$0xff]
  %38 = vset.pattern.permute.xlu0 0
  %39 = vperm.xlu0 %38, %v36
  %v40 = vpop.permute.xlu0 %39
  %v42 = vadd.f32 %v32, %v40
  %v43 = vadd.f32 %v33, %v40
  %v44 = vadd.f32 %v34, %v40
  %v45 = vadd.f32 %v35, %v40
  %v46 = vmax.f32 %v42, 0.0
  %v47 = vmax.f32 %v43, 0.0
  %v48 = vmax.f32 %v44, 0.0
  %v49 = vmax.f32 %v45, 0.0
  %50 = vrot.lane.b32.xlu0 %v46, 17
  %v51 = vpop.permute.xlu0 %50
  %52 = vrot.lane.b32.xlu0 %v47, 17
  %v53 = vpop.permute.xlu0 %52
  %54 = vrot.lane.b32.xlu0 %v48, 17
  %v55 = vpop.permute.xlu0 %54
  %56 = vrot.lane.b32.xlu0 %v49, 17
  %v57 = vpop.permute.xlu0 %56
  %v58 = vlaneseq
  %v59 = vand.u32 %v58, 127
  %vm60 = vcmp.lt.s32.totalorder %v59, 17
  %v61 = vsel %vm60, %v55, %v57
  %v62 = vsel %vm60, %v53, %v55
  %v63 = vsel %vm60, %v51, %v53
  %v64 = vsel %vm60, %v57, %v51
  %v65 = vld [vmem:[%s1] sm:$0xf]
  %v67 = vlaneseq
  %v68 = vshrl.u32 %v67, 7
  %v69 = vsub.s32 0, %v68
  %v70 = vrot.slane %v65, %v69
  %v71 = vlaneseq
  %v72 = vshrl.u32 %v71, 7
  %v73 = vsub.s32 1, %v72
  %v74 = vrot.slane %v65, %v73
  %v75 = vlaneseq
  %v76 = vshrl.u32 %v75, 7
  %v77 = vsub.s32 2, %v76
  %v78 = vrot.slane %v65, %v77
  %v79 = vlaneseq
  %v80 = vshrl.u32 %v79, 7
  %v81 = vsub.s32 3, %v80
  %v82 = vrot.slane %v65, %v81
  %v87 = vmul.f32 %v64, %v70
  %v88 = vmul.f32 %v63, %v74
  %v89 = vmul.f32 %v62, %v78
  %v90 = vmul.f32 %v61, %v82
  %91 = vrot.lane.b32.xlu0 %v46, 16
  %v92 = vpop.permute.xlu0 %91
  %93 = vrot.lane.b32.xlu0 %v47, 16
  %v94 = vpop.permute.xlu0 %93
  %95 = vrot.lane.b32.xlu0 %v48, 16
  %v96 = vpop.permute.xlu0 %95
  %97 = vrot.lane.b32.xlu0 %v49, 16
  %v98 = vpop.permute.xlu0 %97
  %vm99 = vcmp.lt.s32.totalorder %v59, 16
  %v100 = vsel %vm99, %v96, %v98
  %v101 = vsel %vm99, %v94, %v96
  %v102 = vsel %vm99, %v92, %v94
  %v103 = vsel %vm99, %v98, %v92
  %s104 = scalar_lea.vmem %s1, 4
  %v105 = vld [vmem:[%s104] sm:$0xf]
  %v107 = vlaneseq
  %v108 = vshrl.u32 %v107, 7
  %v109 = vsub.s32 0, %v108
  %v110 = vrot.slane %v105, %v109
  %v111 = vlaneseq
  %v112 = vshrl.u32 %v111, 7
  %v113 = vsub.s32 1, %v112
  %v114 = vrot.slane %v105, %v113
  %v115 = vlaneseq
  %v116 = vshrl.u32 %v115, 7
  %v117 = vsub.s32 2, %v116
  %v118 = vrot.slane %v105, %v117
  %v119 = vlaneseq
  %v120 = vshrl.u32 %v119, 7
  %v121 = vsub.s32 3, %v120
  %v122 = vrot.slane %v105, %v121
  %v127 = vmul.f32 %v103, %v110
  %v128 = vmul.f32 %v102, %v114
  %v129 = vmul.f32 %v101, %v118
  %v130 = vmul.f32 %v100, %v122
  %131 = vrot.lane.b32.xlu0 %v46, 15
  %v132 = vpop.permute.xlu0 %131
  %133 = vrot.lane.b32.xlu0 %v47, 15
  %v134 = vpop.permute.xlu0 %133
  %135 = vrot.lane.b32.xlu0 %v48, 15
  %v136 = vpop.permute.xlu0 %135
  %137 = vrot.lane.b32.xlu0 %v49, 15
  %v138 = vpop.permute.xlu0 %137
  %vm139 = vcmp.lt.s32.totalorder %v59, 15
  %v140 = vsel %vm139, %v136, %v138
  %v141 = vsel %vm139, %v134, %v136
  %v142 = vsel %vm139, %v132, %v134
  %v143 = vsel %vm139, %v138, %v132
  %s144 = scalar_lea.vmem %s1, 8
  %v145 = vld [vmem:[%s144] sm:$0xf]
  %v147 = vlaneseq
  %v148 = vshrl.u32 %v147, 7
  %v149 = vsub.s32 0, %v148
  %v150 = vrot.slane %v145, %v149
  %v151 = vlaneseq
  %v152 = vshrl.u32 %v151, 7
  %v153 = vsub.s32 1, %v152
  %v154 = vrot.slane %v145, %v153
  %v155 = vlaneseq
  %v156 = vshrl.u32 %v155, 7
  %v157 = vsub.s32 2, %v156
  %v158 = vrot.slane %v145, %v157
  %v159 = vlaneseq
  %v160 = vshrl.u32 %v159, 7
  %v161 = vsub.s32 3, %v160
  %v162 = vrot.slane %v145, %v161
  %v167 = vmul.f32 %v143, %v150
  %v168 = vmul.f32 %v142, %v154
  %v169 = vmul.f32 %v141, %v158
  %v170 = vmul.f32 %v140, %v162
  %171 = vrot.lane.b32.xlu0 %v46, 1
  %v172 = vpop.permute.xlu0 %171
  %173 = vrot.lane.b32.xlu0 %v47, 1
  %v174 = vpop.permute.xlu0 %173
  %175 = vrot.lane.b32.xlu0 %v48, 1
  %v176 = vpop.permute.xlu0 %175
  %177 = vrot.lane.b32.xlu0 %v49, 1
  %v178 = vpop.permute.xlu0 %177
  %vm179 = vcmp.lt.s32.totalorder %v59, 1
  %v180 = vsel %vm179, %v176, %v178
  %v181 = vsel %vm179, %v174, %v176
  %v182 = vsel %vm179, %v172, %v174
  %v183 = vsel %vm179, %v178, %v172
  %s184 = scalar_lea.vmem %s1, 12
  %v185 = vld [vmem:[%s184] sm:$0xf]
  %v187 = vlaneseq
  %v188 = vshrl.u32 %v187, 7
  %v189 = vsub.s32 0, %v188
  %v190 = vrot.slane %v185, %v189
  %v191 = vlaneseq
  %v192 = vshrl.u32 %v191, 7
  %v193 = vsub.s32 1, %v192
  %v194 = vrot.slane %v185, %v193
  %v195 = vlaneseq
  %v196 = vshrl.u32 %v195, 7
  %v197 = vsub.s32 2, %v196
  %v198 = vrot.slane %v185, %v197
  %v199 = vlaneseq
  %v200 = vshrl.u32 %v199, 7
  %v201 = vsub.s32 3, %v200
  %v202 = vrot.slane %v185, %v201
  %v207 = vmul.f32 %v183, %v190
  %v208 = vmul.f32 %v182, %v194
  %v209 = vmul.f32 %v181, %v198
  %v210 = vmul.f32 %v180, %v202
  %211 = vrot.lane.b32.xlu0 %v46, 127
  %v212 = vpop.permute.xlu0 %211
  %213 = vrot.lane.b32.xlu0 %v47, 127
  %v214 = vpop.permute.xlu0 %213
  %215 = vrot.lane.b32.xlu0 %v48, 127
  %v216 = vpop.permute.xlu0 %215
  %217 = vrot.lane.b32.xlu0 %v49, 127
  %v218 = vpop.permute.xlu0 %217
  %vm219 = vcmp.lt.s32.totalorder %v59, 127
  %v220 = vsel %vm219, %v216, %v218
  %v221 = vsel %vm219, %v214, %v216
  %v222 = vsel %vm219, %v212, %v214
  %v223 = vsel %vm219, %v218, %v212
  %s224 = scalar_lea.vmem %s1, 20
  %v225 = vld [vmem:[%s224] sm:$0xf]
  %v227 = vlaneseq
  %v228 = vshrl.u32 %v227, 7
  %v229 = vsub.s32 0, %v228
  %v230 = vrot.slane %v225, %v229
  %v231 = vlaneseq
  %v232 = vshrl.u32 %v231, 7
  %v233 = vsub.s32 1, %v232
  %v234 = vrot.slane %v225, %v233
  %v235 = vlaneseq
  %v236 = vshrl.u32 %v235, 7
  %v237 = vsub.s32 2, %v236
  %v238 = vrot.slane %v225, %v237
  %v239 = vlaneseq
  %v240 = vshrl.u32 %v239, 7
  %v241 = vsub.s32 3, %v240
  %v242 = vrot.slane %v225, %v241
  %v247 = vmul.f32 %v222, %v230
  %v248 = vmul.f32 %v221, %v234
  %v249 = vmul.f32 %v220, %v238
  %v250 = vmul.f32 %v223, %v242
  %251 = vrot.lane.b32.xlu0 %v46, 113
  %v252 = vpop.permute.xlu0 %251
  %253 = vrot.lane.b32.xlu0 %v47, 113
  %v254 = vpop.permute.xlu0 %253
  %255 = vrot.lane.b32.xlu0 %v48, 113
  %v256 = vpop.permute.xlu0 %255
  %257 = vrot.lane.b32.xlu0 %v49, 113
  %v258 = vpop.permute.xlu0 %257
  %vm259 = vcmp.lt.s32.totalorder %v59, 113
  %v260 = vsel %vm259, %v256, %v258
  %v261 = vsel %vm259, %v254, %v256
  %v262 = vsel %vm259, %v252, %v254
  %v263 = vsel %vm259, %v258, %v252
  %s264 = scalar_lea.vmem %s1, 24
  %v265 = vld [vmem:[%s264] sm:$0xf]
  %v267 = vlaneseq
  %v268 = vshrl.u32 %v267, 7
  %v269 = vsub.s32 0, %v268
  %v270 = vrot.slane %v265, %v269
  %v271 = vlaneseq
  %v272 = vshrl.u32 %v271, 7
  %v273 = vsub.s32 1, %v272
  %v274 = vrot.slane %v265, %v273
  %v275 = vlaneseq
  %v276 = vshrl.u32 %v275, 7
  %v277 = vsub.s32 2, %v276
  %v278 = vrot.slane %v265, %v277
  %v279 = vlaneseq
  %v280 = vshrl.u32 %v279, 7
  %v281 = vsub.s32 3, %v280
  %v282 = vrot.slane %v265, %v281
  %v287 = vmul.f32 %v262, %v270
  %v288 = vmul.f32 %v261, %v274
  %v289 = vmul.f32 %v260, %v278
  %v290 = vmul.f32 %v263, %v282
  %291 = vrot.lane.b32.xlu0 %v46, 112
  %v292 = vpop.permute.xlu0 %291
  %293 = vrot.lane.b32.xlu0 %v47, 112
  %v294 = vpop.permute.xlu0 %293
  %295 = vrot.lane.b32.xlu0 %v48, 112
  %v296 = vpop.permute.xlu0 %295
  %297 = vrot.lane.b32.xlu0 %v49, 112
  %v298 = vpop.permute.xlu0 %297
  %vm299 = vcmp.lt.s32.totalorder %v59, 112
  %v300 = vsel %vm299, %v296, %v298
  %v301 = vsel %vm299, %v294, %v296
  %v302 = vsel %vm299, %v292, %v294
  %v303 = vsel %vm299, %v298, %v292
  %s304 = scalar_lea.vmem %s1, 28
  %v305 = vld [vmem:[%s304] sm:$0xf]
  %v307 = vlaneseq
  %v308 = vshrl.u32 %v307, 7
  %v309 = vsub.s32 0, %v308
  %v310 = vrot.slane %v305, %v309
  %v311 = vlaneseq
  %v312 = vshrl.u32 %v311, 7
  %v313 = vsub.s32 1, %v312
  %v314 = vrot.slane %v305, %v313
  %v315 = vlaneseq
  %v316 = vshrl.u32 %v315, 7
  %v317 = vsub.s32 2, %v316
  %v318 = vrot.slane %v305, %v317
  %v319 = vlaneseq
  %v320 = vshrl.u32 %v319, 7
  %v321 = vsub.s32 3, %v320
  %v322 = vrot.slane %v305, %v321
  %v327 = vmul.f32 %v302, %v310
  %v328 = vmul.f32 %v301, %v314
  %v329 = vmul.f32 %v300, %v318
  %v330 = vmul.f32 %v303, %v322
  %331 = vrot.lane.b32.xlu0 %v46, 111
  %v332 = vpop.permute.xlu0 %331
  %333 = vrot.lane.b32.xlu0 %v47, 111
  %v334 = vpop.permute.xlu0 %333
  %335 = vrot.lane.b32.xlu0 %v48, 111
  %v336 = vpop.permute.xlu0 %335
  %337 = vrot.lane.b32.xlu0 %v49, 111
  %v338 = vpop.permute.xlu0 %337
  %vm339 = vcmp.lt.s32.totalorder %v59, 111
  %v340 = vsel %vm339, %v336, %v338
  %v341 = vsel %vm339, %v334, %v336
  %v342 = vsel %vm339, %v332, %v334
  %v343 = vsel %vm339, %v338, %v332
  %s344 = scalar_lea.vmem %s1, 32
  %v345 = vld [vmem:[%s344] sm:$0xf]
  %v347 = vlaneseq
  %v348 = vshrl.u32 %v347, 7
  %v349 = vsub.s32 0, %v348
  %v350 = vrot.slane %v345, %v349
  %v351 = vlaneseq
  %v352 = vshrl.u32 %v351, 7
  %v353 = vsub.s32 1, %v352
  %v354 = vrot.slane %v345, %v353
  %v355 = vlaneseq
  %v356 = vshrl.u32 %v355, 7
  %v357 = vsub.s32 2, %v356
  %v358 = vrot.slane %v345, %v357
  %v359 = vlaneseq
  %v360 = vshrl.u32 %v359, 7
  %v361 = vsub.s32 3, %v360
  %v362 = vrot.slane %v345, %v361
  %v367 = vmul.f32 %v342, %v350
  %v368 = vmul.f32 %v341, %v354
  %v369 = vmul.f32 %v340, %v358
  %v370 = vmul.f32 %v343, %v362
  %v371 = vld [vmem:[%s4] sm:$0xff]
  %vm372 = vcmask 588800
  %v374 = vsel %vm372, %v371, 0
  %376 = vmatprep.subr.mxu0 %v88
  %377 = vmatpush1.msra.mxu0 %v87
  %378 = vmatprep.subr.mxu0 %v128
  %379 = vmatpush1.msra.mxu0 %v127
  %380 = vmatprep.subr.mxu0 %v168
  %381 = vmatpush1.msra.mxu0 %v167
  %382 = vmatprep.subr.mxu0 %v208
  %383 = vmatpush1.msra.mxu0 %v207
  %384 = vmatprep.subr.mxu0 %v47
  %385 = vmatpush1.msra.mxu0 %v46
  %386 = vmatprep.subr.mxu0 %v248
  %387 = vmatpush1.msra.mxu0 %v247
  %388 = vmatprep.subr.mxu0 %v288
  %389 = vmatpush1.msra.mxu0 %v287
  %390 = vmatprep.subr.mxu0 %v328
  %391 = vmatpush1.msra.mxu0 %v327
  %392 = vmatprep.subr.mxu0 %v368
  %393 = vmatpush1.msra.mxu0 %v367
  %394 = vmatprep.subr.mxu0 0.0
  %395 = vmatpush1.msra.mxu0 0.0
  %396 = vmatprep.subr.mxu0 0.0
  %397 = vmatpush1.msra.mxu0 0.0
  %398 = vmatprep.subr.mxu0 0.0
  %399 = vmatpush1.msra.mxu0 0.0
  %400 = vmatprep.subr.mxu0 0.0
  %401 = vmatpush1.msra.mxu0 0.0
  %402 = vmatprep.subr.mxu0 0.0
  %403 = vmatpush1.msra.mxu0 0.0
  %404 = vmatprep.subr.mxu0 0.0
  %405 = vmatpush1.msra.mxu0 0.0
  %406 = vmatprep.subr.mxu0 0.0
  %407 = vmatpush1.msra.mxu0 0.0
  %408 = vmatprep.subr.mxu0 0.0
  %409 = vmatpush1.msra.mxu0 0.0
  %410 = vmatprep.subr.mxu0 0.0
  %411 = vmatpush1.msra.mxu0 0.0
  %412 = vmatprep.subr.mxu0 0.0
  %413 = vmatpush1.msra.mxu0 0.0
  %414 = vmatprep.subr.mxu0 0.0
  %415 = vmatpush1.msra.mxu0 0.0
  %416 = vmatprep.subr.mxu0 0.0
  %417 = vmatpush1.msra.mxu0 0.0
  %418 = vmatprep.subr.mxu0 0.0
  %419 = vmatpush1.msra.mxu0 0.0
  %420 = vmatprep.subr.mxu0 0.0
  %421 = vmatpush1.msra.mxu0 0.0
  %422 = vmatprep.subr.mxu0 0.0
  %423 = vmatpush1.msra.mxu0 0.0
  %424 = vmatprep.subr.mxu0 0.0
  %425 = vmatpush1.msra.mxu0 0.0
  %426 = vmatprep.subr.mxu0 0.0
  %427 = vmatpush1.msra.mxu0 0.0
  %428 = vmatprep.subr.mxu0 0.0
  %429 = vmatpush1.msra.mxu0 0.0
  %430 = vmatprep.subr.mxu0 0.0
  %431 = vmatpush1.msra.mxu0 0.0
  %432 = vmatprep.subr.mxu0 0.0
  %433 = vmatpush1.msra.mxu0 0.0
  %434 = vmatprep.subr.mxu0 0.0
  %435 = vmatpush1.msra.mxu0 0.0
  %436 = vmatprep.subr.mxu0 0.0
  %437 = vmatpush1.msra.mxu0 0.0
  %438 = vmatprep.subr.mxu0 0.0
  %439 = vmatpush1.msra.mxu0 0.0
  %440 = vmatprep.mubr.f32.mxu0 0.0
  %441 = vmatmul.mubr.f32.gmra.mrb[0].mxu0 %v374
  %v442 = vpop.f32.mrb[0].mxu0
  %v443 = vadd.f32 0.0, %v442
  %v444 = vpop.f32.mrb[0].mxu0
  %v445 = vadd.f32 0.0, %v444
  %446 = vdwg.mxu0
  %447 = vmatprep.subr.mxu0 %v90
  %448 = vmatpush1.msra.mxu0 %v89
  %449 = vmatprep.subr.mxu0 %v130
  %450 = vmatpush1.msra.mxu0 %v129
  %451 = vmatprep.subr.mxu0 %v170
  %452 = vmatpush1.msra.mxu0 %v169
  %453 = vmatprep.subr.mxu0 %v210
  %454 = vmatpush1.msra.mxu0 %v209
  %455 = vmatprep.subr.mxu0 %v49
  %456 = vmatpush1.msra.mxu0 %v48
  %457 = vmatprep.subr.mxu0 %v250
  %458 = vmatpush1.msra.mxu0 %v249
  %459 = vmatprep.subr.mxu0 %v290
  %460 = vmatpush1.msra.mxu0 %v289
  %461 = vmatprep.subr.mxu0 %v330
  %462 = vmatpush1.msra.mxu0 %v329
  %463 = vmatprep.subr.mxu0 %v370
  %464 = vmatpush1.msra.mxu0 %v369
  %465 = vmatprep.subr.mxu0 0.0
  %466 = vmatpush1.msra.mxu0 0.0
  %467 = vmatprep.subr.mxu0 0.0
  %468 = vmatpush1.msra.mxu0 0.0
  %469 = vmatprep.subr.mxu0 0.0
  %470 = vmatpush1.msra.mxu0 0.0
  %471 = vmatprep.subr.mxu0 0.0
  %472 = vmatpush1.msra.mxu0 0.0
  %473 = vmatprep.subr.mxu0 0.0
  %474 = vmatpush1.msra.mxu0 0.0
  %475 = vmatprep.subr.mxu0 0.0
  %476 = vmatpush1.msra.mxu0 0.0
  %477 = vmatprep.subr.mxu0 0.0
  %478 = vmatpush1.msra.mxu0 0.0
  %479 = vmatprep.subr.mxu0 0.0
  %480 = vmatpush1.msra.mxu0 0.0
  %481 = vmatprep.subr.mxu0 0.0
  %482 = vmatpush1.msra.mxu0 0.0
  %483 = vmatprep.subr.mxu0 0.0
  %484 = vmatpush1.msra.mxu0 0.0
  %485 = vmatprep.subr.mxu0 0.0
  %486 = vmatpush1.msra.mxu0 0.0
  %487 = vmatprep.subr.mxu0 0.0
  %488 = vmatpush1.msra.mxu0 0.0
  %489 = vmatprep.subr.mxu0 0.0
  %490 = vmatpush1.msra.mxu0 0.0
  %491 = vmatprep.subr.mxu0 0.0
  %492 = vmatpush1.msra.mxu0 0.0
  %493 = vmatprep.subr.mxu0 0.0
  %494 = vmatpush1.msra.mxu0 0.0
  %495 = vmatprep.subr.mxu0 0.0
  %496 = vmatpush1.msra.mxu0 0.0
  %497 = vmatprep.subr.mxu0 0.0
  %498 = vmatpush1.msra.mxu0 0.0
  %499 = vmatprep.subr.mxu0 0.0
  %500 = vmatpush1.msra.mxu0 0.0
  %501 = vmatprep.subr.mxu0 0.0
  %502 = vmatpush1.msra.mxu0 0.0
  %503 = vmatprep.subr.mxu0 0.0
  %504 = vmatpush1.msra.mxu0 0.0
  %505 = vmatprep.subr.mxu0 0.0
  %506 = vmatpush1.msra.mxu0 0.0
  %507 = vmatprep.subr.mxu0 0.0
  %508 = vmatpush1.msra.mxu0 0.0
  %509 = vmatprep.subr.mxu0 0.0
  %510 = vmatpush1.msra.mxu0 0.0
  %511 = vmatprep.mubr.f32.mxu0 0.0
  %512 = vmatmul.mubr.f32.gmra.mrb[0].mxu0 %v374
  %v513 = vpop.f32.mrb[0].mxu0
  %v514 = vadd.f32 0.0, %v513
  %v515 = vpop.f32.mrb[0].mxu0
  %v516 = vadd.f32 0.0, %v515
  %517 = vdwg.mxu0
  %518 = vst [vmem:[%s5] sm:$0xff] %v443
  %519 = vst [vmem:[%s5 + $0x8] sm:$0xff] %v445
  %520 = vst [vmem:[%s5 + $0x10] sm:$0xff] %v514
  %521 = vst [vmem:[%s5 + $0x18] sm:$0xff] %v516
  %v522 = vadd.f32 %v443, %v445
  %v523 = vadd.f32 %v522, %v514
  %v524 = vadd.f32 %v523, %v516
  %525 = vadd.xlane.f32.xlu0 %v524
  %v526 = vpop.xlane.xlu0 %525
  %v527 = vmul.f32 %v443, %v443
  %v528 = vmul.f32 %v445, %v445
  %v529 = vmul.f32 %v514, %v514
  %v530 = vmul.f32 %v516, %v516
  %v531 = vadd.f32 %v527, %v528
  %v532 = vadd.f32 %v531, %v529
  %v533 = vadd.f32 %v532, %v530
  %534 = vadd.xlane.f32.xlu0 %v533
  %v535 = vpop.xlane.xlu0 %534
  %vm536 = vcmask 7168
  %v537 = vsel %vm536, %v526, %v535
  %vm538 = vcmask 15360
  %539 = vst.msk [vmem:[%s6] sm:$0xff] %vm538, %v537
  // Predicated region
  $region22: #{double_conv.4} parent=0 // pred_check
    _
  $region23: #{double_conv.4} parent=0 // pred_check_branch
    %541 = sbr.rel (0) target = $region25
  $region24: #{double_conv.4} parent=0 // pred_region
    _
  $region25: #{double_conv.4} parent=0 // pred_fallthru
    _
  // Predicated region
  $region26: #{double_conv.4} parent=0 // pred_check
    _
  $region27: #{double_conv.4} parent=0 // pred_check_branch
    %543 = sbr.rel (0) target = $region29
  $region28: #{double_conv.4} parent=0 // pred_region
    _
  $region29: #{double_conv.4} parent=0 // pred_fallthru
    _
  // Predicated region
  $region30: #{double_conv.4} parent=0 // pred_check
    _
  $region31: #{double_conv.4} parent=0 // pred_check_branch
    %545 = sbr.rel (0) target = $region33
  $region32: #{double_conv.4} parent=0 // pred_region
    _
  $region33: #{double_conv.4} parent=0 // pred_fallthru
    _
  // Predicated region
  $region34: #{double_conv.4} parent=0 // pred_check
    _
  $region35: #{double_conv.4} parent=0 // pred_check_branch
    %547 = sbr.rel (0) target = $region37
  $region36: #{double_conv.4} parent=0 // pred_region
    _
  $region37: #{double_conv.4} parent=0 // pred_fallthru
    _

// kernel: double_conv.3
$region0: #{double_conv.3}
  #allocation0 [shape = 'u32[]', space=smem, size = 0x4, offset = 0x4, fixed_abs, tag = 'smem constant byte address 0x4 - core index']
  #allocation1 [shape = 'u32[144,128]{1,0:T(1,128)}', space=vmem, size = 0x12000, scoped, tag = 'internal scratch']
  %s0 = inlined_call_operand.vmem [shape: f32[8,512], index: 0, kind: input, shape index: {}]
  %s1 = inlined_call_operand.vmem [shape: f32[9,1,512], index: 1, kind: input, shape index: {}]
  %s2 = inlined_call_operand.vmem [shape: f32[8,1], index: 2, kind: input, shape index: {}]
  %s3 = inlined_call_operand.vmem [shape: f32[8,1], index: 3, kind: input, shape index: {}]
  %s4 = inlined_call_operand.vmem [shape: f32[8,72], index: 4, kind: input, shape index: {}]
  %s5 = inlined_call_operand.vmem [shape: f32[8,512], index: 5, kind: output, shape index: {0}]
  %s6 = inlined_call_operand.vmem [shape: f32[1,8,2], index: 6, kind: output, shape index: {1}]
  %7 = xla_tuple %s5, %s6
  %s8 = sld [smem:[#allocation0]]
  $region38: #{double_conv.3} parent=0
    _
  %s10 = ssub.s32 1, %s8
  %s11 = scalar_select 0, %s10, %s8
  // Predicated region
  $region2: #{double_conv.3} parent=0 // pred_check
    _
  $region3: #{double_conv.3} parent=0 // pred_check_branch
    %13 = sbr.rel (0) target = $region5
  $region4: #{double_conv.3} parent=0 // pred_region
    _
  $region5: #{double_conv.3} parent=0 // pred_fallthru
    _
  // Predicated region
  $region6: #{double_conv.3} parent=0 // pred_check
    _
  $region7: #{double_conv.3} parent=0 // pred_check_branch
    %15 = sbr.rel (0) target = $region9
  $region8: #{double_conv.3} parent=0 // pred_region
    _
  $region9: #{double_conv.3} parent=0 // pred_fallthru
    _
  // Predicated region
  $region10: #{double_conv.3} parent=0 // pred_check
    _
  $region11: #{double_conv.3} parent=0 // pred_check_branch
    %17 = sbr.rel (0) target = $region13
  $region12: #{double_conv.3} parent=0 // pred_region
    _
  $region13: #{double_conv.3} parent=0 // pred_fallthru
    _
  // Predicated region
  $region14: #{double_conv.3} parent=0 // pred_check
    _
  $region15: #{double_conv.3} parent=0 // pred_check_branch
    %19 = sbr.rel (0) target = $region17
  $region16: #{double_conv.3} parent=0 // pred_region
    _
  $region17: #{double_conv.3} parent=0 // pred_fallthru
    _
  // Predicated region
  $region18: #{double_conv.3} parent=0 // pred_check
    _
  $region19: #{double_conv.3} parent=0 // pred_check_branch
    %21 = sbr.rel (0) target = $region21
  $region20: #{double_conv.3} parent=0 // pred_region
    _
  $region21: #{double_conv.3} parent=0 // pred_fallthru
    _
  %v22 = vld [vmem:[%s0] sm:$0xff]
  %v23 = vld [vmem:[%s0 + $0x8] sm:$0xff]
  %v24 = vld [vmem:[%s0 + $0x10] sm:$0xff]
  %v25 = vld [vmem:[%s0 + $0x18] sm:$0xff]
  %26 = vrot.lane.b32.xlu0 %v22, 17
  %v27 = vpop.permute.xlu0 %26
  %28 = vrot.lane.b32.xlu0 %v23, 17
  %v29 = vpop.permute.xlu0 %28
  %30 = vrot.lane.b32.xlu0 %v24, 17
  %v31 = vpop.permute.xlu0 %30
  %32 = vrot.lane.b32.xlu0 %v25, 17
  %v33 = vpop.permute.xlu0 %32
  %v34 = vlaneseq
  %v35 = vand.u32 %v34, 127
  %vm36 = vcmp.lt.s32.totalorder %v35, 17
  %v37 = vsel %vm36, %v31, %v33
  %v38 = vsel %vm36, %v29, %v31
  %v39 = vsel %vm36, %v27, %v29
  %v40 = vsel %vm36, %v33, %v27
  %v41 = vld [vmem:[%s1] sm:$0xf]
  %v43 = vlaneseq
  %v44 = vshrl.u32 %v43, 7
  %v45 = vsub.s32 0, %v44
  %v46 = vrot.slane %v41, %v45
  %v47 = vlaneseq
  %v48 = vshrl.u32 %v47, 7
  %v49 = vsub.s32 1, %v48
  %v50 = vrot.slane %v41, %v49
  %v51 = vlaneseq
  %v52 = vshrl.u32 %v51, 7
  %v53 = vsub.s32 2, %v52
  %v54 = vrot.slane %v41, %v53
  %v55 = vlaneseq
  %v56 = vshrl.u32 %v55, 7
  %v57 = vsub.s32 3, %v56
  %v58 = vrot.slane %v41, %v57
  %v63 = vmul.f32 %v40, %v46
  %v64 = vmul.f32 %v39, %v50
  %v65 = vmul.f32 %v38, %v54
  %v66 = vmul.f32 %v37, %v58
  %67 = vrot.lane.b32.xlu0 %v22, 16
  %v68 = vpop.permute.xlu0 %67
  %69 = vrot.lane.b32.xlu0 %v23, 16
  %v70 = vpop.permute.xlu0 %69
  %71 = vrot.lane.b32.xlu0 %v24, 16
  %v72 = vpop.permute.xlu0 %71
  %73 = vrot.lane.b32.xlu0 %v25, 16
  %v74 = vpop.permute.xlu0 %73
  %vm75 = vcmp.lt.s32.totalorder %v35, 16
  %v76 = vsel %vm75, %v72, %v74
  %v77 = vsel %vm75, %v70, %v72
  %v78 = vsel %vm75, %v68, %v70
  %v79 = vsel %vm75, %v74, %v68
  %s80 = scalar_lea.vmem %s1, 4
  %v81 = vld [vmem:[%s80] sm:$0xf]
  %v83 = vlaneseq
  %v84 = vshrl.u32 %v83, 7
  %v85 = vsub.s32 0, %v84
  %v86 = vrot.slane %v81, %v85
  %v87 = vlaneseq
  %v88 = vshrl.u32 %v87, 7
  %v89 = vsub.s32 1, %v88
  %v90 = vrot.slane %v81, %v89
  %v91 = vlaneseq
  %v92 = vshrl.u32 %v91, 7
  %v93 = vsub.s32 2, %v92
  %v94 = vrot.slane %v81, %v93
  %v95 = vlaneseq
  %v96 = vshrl.u32 %v95, 7
  %v97 = vsub.s32 3, %v96
  %v98 = vrot.slane %v81, %v97
  %v103 = vmul.f32 %v79, %v86
  %v104 = vmul.f32 %v78, %v90
  %v105 = vmul.f32 %v77, %v94
  %v106 = vmul.f32 %v76, %v98
  %107 = vrot.lane.b32.xlu0 %v22, 15
  %v108 = vpop.permute.xlu0 %107
  %109 = vrot.lane.b32.xlu0 %v23, 15
  %v110 = vpop.permute.xlu0 %109
  %111 = vrot.lane.b32.xlu0 %v24, 15
  %v112 = vpop.permute.xlu0 %111
  %113 = vrot.lane.b32.xlu0 %v25, 15
  %v114 = vpop.permute.xlu0 %113
  %vm115 = vcmp.lt.s32.totalorder %v35, 15
  %v116 = vsel %vm115, %v112, %v114
  %v117 = vsel %vm115, %v110, %v112
  %v118 = vsel %vm115, %v108, %v110
  %v119 = vsel %vm115, %v114, %v108
  %s120 = scalar_lea.vmem %s1, 8
  %v121 = vld [vmem:[%s120] sm:$0xf]
  %v123 = vlaneseq
  %v124 = vshrl.u32 %v123, 7
  %v125 = vsub.s32 0, %v124
  %v126 = vrot.slane %v121, %v125
  %v127 = vlaneseq
  %v128 = vshrl.u32 %v127, 7
  %v129 = vsub.s32 1, %v128
  %v130 = vrot.slane %v121, %v129
  %v131 = vlaneseq
  %v132 = vshrl.u32 %v131, 7
  %v133 = vsub.s32 2, %v132
  %v134 = vrot.slane %v121, %v133
  %v135 = vlaneseq
  %v136 = vshrl.u32 %v135, 7
  %v137 = vsub.s32 3, %v136
  %v138 = vrot.slane %v121, %v137
  %v143 = vmul.f32 %v119, %v126
  %v144 = vmul.f32 %v118, %v130
  %v145 = vmul.f32 %v117, %v134
  %v146 = vmul.f32 %v116, %v138
  %147 = vrot.lane.b32.xlu0 %v22, 1
  %v148 = vpop.permute.xlu0 %147
  %149 = vrot.lane.b32.xlu0 %v23, 1
  %v150 = vpop.permute.xlu0 %149
  %151 = vrot.lane.b32.xlu0 %v24, 1
  %v152 = vpop.permute.xlu0 %151
  %153 = vrot.lane.b32.xlu0 %v25, 1
  %v154 = vpop.permute.xlu0 %153
  %vm155 = vcmp.lt.s32.totalorder %v35, 1
  %v156 = vsel %vm155, %v152, %v154
  %v157 = vsel %vm155, %v150, %v152
  %v158 = vsel %vm155, %v148, %v150
  %v159 = vsel %vm155, %v154, %v148
  %s160 = scalar_lea.vmem %s1, 12
  %v161 = vld [vmem:[%s160] sm:$0xf]
  %v163 = vlaneseq
  %v164 = vshrl.u32 %v163, 7
  %v165 = vsub.s32 0, %v164
  %v166 = vrot.slane %v161, %v165
  %v167 = vlaneseq
  %v168 = vshrl.u32 %v167, 7
  %v169 = vsub.s32 1, %v168
  %v170 = vrot.slane %v161, %v169
  %v171 = vlaneseq
  %v172 = vshrl.u32 %v171, 7
  %v173 = vsub.s32 2, %v172
  %v174 = vrot.slane %v161, %v173
  %v175 = vlaneseq
  %v176 = vshrl.u32 %v175, 7
  %v177 = vsub.s32 3, %v176
  %v178 = vrot.slane %v161, %v177
  %v183 = vmul.f32 %v159, %v166
  %v184 = vmul.f32 %v158, %v170
  %v185 = vmul.f32 %v157, %v174
  %v186 = vmul.f32 %v156, %v178
  %187 = vrot.lane.b32.xlu0 %v22, 127
  %v188 = vpop.permute.xlu0 %187
  %189 = vrot.lane.b32.xlu0 %v23, 127
  %v190 = vpop.permute.xlu0 %189
  %191 = vrot.lane.b32.xlu0 %v24, 127
  %v192 = vpop.permute.xlu0 %191
  %193 = vrot.lane.b32.xlu0 %v25, 127
  %v194 = vpop.permute.xlu0 %193
  %vm195 = vcmp.lt.s32.totalorder %v35, 127
  %v196 = vsel %vm195, %v192, %v194
  %v197 = vsel %vm195, %v190, %v192
  %v198 = vsel %vm195, %v188, %v190
  %v199 = vsel %vm195, %v194, %v188
  %s200 = scalar_lea.vmem %s1, 20
  %v201 = vld [vmem:[%s200] sm:$0xf]
  %v203 = vlaneseq
  %v204 = vshrl.u32 %v203, 7
  %v205 = vsub.s32 0, %v204
  %v206 = vrot.slane %v201, %v205
  %v207 = vlaneseq
  %v208 = vshrl.u32 %v207, 7
  %v209 = vsub.s32 1, %v208
  %v210 = vrot.slane %v201, %v209
  %v211 = vlaneseq
  %v212 = vshrl.u32 %v211, 7
  %v213 = vsub.s32 2, %v212
  %v214 = vrot.slane %v201, %v213
  %v215 = vlaneseq
  %v216 = vshrl.u32 %v215, 7
  %v217 = vsub.s32 3, %v216
  %v218 = vrot.slane %v201, %v217
  %v223 = vmul.f32 %v198, %v206
  %v224 = vmul.f32 %v197, %v210
  %v225 = vmul.f32 %v196, %v214
  %v226 = vmul.f32 %v199, %v218
  %227 = vrot.lane.b32.xlu0 %v22, 113
  %v228 = vpop.permute.xlu0 %227
  %229 = vrot.lane.b32.xlu0 %v23, 113
  %v230 = vpop.permute.xlu0 %229
  %231 = vrot.lane.b32.xlu0 %v24, 113
  %v232 = vpop.permute.xlu0 %231
  %233 = vrot.lane.b32.xlu0 %v25, 113
  %v234 = vpop.permute.xlu0 %233
  %vm235 = vcmp.lt.s32.totalorder %v35, 113
  %v236 = vsel %vm235, %v232, %v234
  %v237 = vsel %vm235, %v230, %v232
  %v238 = vsel %vm235, %v228, %v230
  %v239 = vsel %vm235, %v234, %v228
  %s240 = scalar_lea.vmem %s1, 24
  %v241 = vld [vmem:[%s240] sm:$0xf]
  %v243 = vlaneseq
  %v244 = vshrl.u32 %v243, 7
  %v245 = vsub.s32 0, %v244
  %v246 = vrot.slane %v241, %v245
  %v247 = vlaneseq
  %v248 = vshrl.u32 %v247, 7
  %v249 = vsub.s32 1, %v248
  %v250 = vrot.slane %v241, %v249
  %v251 = vlaneseq
  %v252 = vshrl.u32 %v251, 7
  %v253 = vsub.s32 2, %v252
  %v254 = vrot.slane %v241, %v253
  %v255 = vlaneseq
  %v256 = vshrl.u32 %v255, 7
  %v257 = vsub.s32 3, %v256
  %v258 = vrot.slane %v241, %v257
  %v263 = vmul.f32 %v238, %v246
  %v264 = vmul.f32 %v237, %v250
  %v265 = vmul.f32 %v236, %v254
  %v266 = vmul.f32 %v239, %v258
  %267 = vrot.lane.b32.xlu0 %v22, 112
  %v268 = vpop.permute.xlu0 %267
  %269 = vrot.lane.b32.xlu0 %v23, 112
  %v270 = vpop.permute.xlu0 %269
  %271 = vrot.lane.b32.xlu0 %v24, 112
  %v272 = vpop.permute.xlu0 %271
  %273 = vrot.lane.b32.xlu0 %v25, 112
  %v274 = vpop.permute.xlu0 %273
  %vm275 = vcmp.lt.s32.totalorder %v35, 112
  %v276 = vsel %vm275, %v272, %v274
  %v277 = vsel %vm275, %v270, %v272
  %v278 = vsel %vm275, %v268, %v270
  %v279 = vsel %vm275, %v274, %v268
  %s280 = scalar_lea.vmem %s1, 28
  %v281 = vld [vmem:[%s280] sm:$0xf]
  %v283 = vlaneseq
  %v284 = vshrl.u32 %v283, 7
  %v285 = vsub.s32 0, %v284
  %v286 = vrot.slane %v281, %v285
  %v287 = vlaneseq
  %v288 = vshrl.u32 %v287, 7
  %v289 = vsub.s32 1, %v288
  %v290 = vrot.slane %v281, %v289
  %v291 = vlaneseq
  %v292 = vshrl.u32 %v291, 7
  %v293 = vsub.s32 2, %v292
  %v294 = vrot.slane %v281, %v293
  %v295 = vlaneseq
  %v296 = vshrl.u32 %v295, 7
  %v297 = vsub.s32 3, %v296
  %v298 = vrot.slane %v281, %v297
  %v303 = vmul.f32 %v278, %v286
  %v304 = vmul.f32 %v277, %v290
  %v305 = vmul.f32 %v276, %v294
  %v306 = vmul.f32 %v279, %v298
  %307 = vrot.lane.b32.xlu0 %v22, 111
  %v308 = vpop.permute.xlu0 %307
  %309 = vrot.lane.b32.xlu0 %v23, 111
  %v310 = vpop.permute.xlu0 %309
  %311 = vrot.lane.b32.xlu0 %v24, 111
  %v312 = vpop.permute.xlu0 %311
  %313 = vrot.lane.b32.xlu0 %v25, 111
  %v314 = vpop.permute.xlu0 %313
  %vm315 = vcmp.lt.s32.totalorder %v35, 111
  %v316 = vsel %vm315, %v312, %v314
  %v317 = vsel %vm315, %v310, %v312
  %v318 = vsel %vm315, %v308, %v310
  %v319 = vsel %vm315, %v314, %v308
  %s320 = scalar_lea.vmem %s1, 32
  %v321 = vld [vmem:[%s320] sm:$0xf]
  %v323 = vlaneseq
  %v324 = vshrl.u32 %v323, 7
  %v325 = vsub.s32 0, %v324
  %v326 = vrot.slane %v321, %v325
  %v327 = vlaneseq
  %v328 = vshrl.u32 %v327, 7
  %v329 = vsub.s32 1, %v328
  %v330 = vrot.slane %v321, %v329
  %v331 = vlaneseq
  %v332 = vshrl.u32 %v331, 7
  %v333 = vsub.s32 2, %v332
  %v334 = vrot.slane %v321, %v333
  %v335 = vlaneseq
  %v336 = vshrl.u32 %v335, 7
  %v337 = vsub.s32 3, %v336
  %v338 = vrot.slane %v321, %v337
  %v343 = vmul.f32 %v318, %v326
  %v344 = vmul.f32 %v317, %v330
  %v345 = vmul.f32 %v316, %v334
  %v346 = vmul.f32 %v319, %v338
  %v347 = vld [vmem:[%s4] sm:$0xff]
  %vm348 = vcmask 588800
  %v350 = vsel %vm348, %v347, 0
  %352 = vmatprep.subr.mxu0 %v64
  %353 = vmatpush1.msra.mxu0 %v63
  %354 = vmatprep.subr.mxu0 %v104
  %355 = vmatpush1.msra.mxu0 %v103
  %356 = vmatprep.subr.mxu0 %v144
  %357 = vmatpush1.msra.mxu0 %v143
  %358 = vmatprep.subr.mxu0 %v184
  %359 = vmatpush1.msra.mxu0 %v183
  %360 = vmatprep.subr.mxu0 %v23
  %361 = vmatpush1.msra.mxu0 %v22
  %362 = vmatprep.subr.mxu0 %v224
  %363 = vmatpush1.msra.mxu0 %v223
  %364 = vmatprep.subr.mxu0 %v264
  %365 = vmatpush1.msra.mxu0 %v263
  %366 = vmatprep.subr.mxu0 %v304
  %367 = vmatpush1.msra.mxu0 %v303
  %368 = vmatprep.subr.mxu0 %v344
  %369 = vmatpush1.msra.mxu0 %v343
  %370 = vmatprep.subr.mxu0 0.0
  %371 = vmatpush1.msra.mxu0 0.0
  %372 = vmatprep.subr.mxu0 0.0
  %373 = vmatpush1.msra.mxu0 0.0
  %374 = vmatprep.subr.mxu0 0.0
  %375 = vmatpush1.msra.mxu0 0.0
  %376 = vmatprep.subr.mxu0 0.0
  %377 = vmatpush1.msra.mxu0 0.0
  %378 = vmatprep.subr.mxu0 0.0
  %379 = vmatpush1.msra.mxu0 0.0
  %380 = vmatprep.subr.mxu0 0.0
  %381 = vmatpush1.msra.mxu0 0.0
  %382 = vmatprep.subr.mxu0 0.0
  %383 = vmatpush1.msra.mxu0 0.0
  %384 = vmatprep.subr.mxu0 0.0
  %385 = vmatpush1.msra.mxu0 0.0
  %386 = vmatprep.subr.mxu0 0.0
  %387 = vmatpush1.msra.mxu0 0.0
  %388 = vmatprep.subr.mxu0 0.0
  %389 = vmatpush1.msra.mxu0 0.0
  %390 = vmatprep.subr.mxu0 0.0
  %391 = vmatpush1.msra.mxu0 0.0
  %392 = vmatprep.subr.mxu0 0.0
  %393 = vmatpush1.msra.mxu0 0.0
  %394 = vmatprep.subr.mxu0 0.0
  %395 = vmatpush1.msra.mxu0 0.0
  %396 = vmatprep.subr.mxu0 0.0
  %397 = vmatpush1.msra.mxu0 0.0
  %398 = vmatprep.subr.mxu0 0.0
  %399 = vmatpush1.msra.mxu0 0.0
  %400 = vmatprep.subr.mxu0 0.0
  %401 = vmatpush1.msra.mxu0 0.0
  %402 = vmatprep.subr.mxu0 0.0
  %403 = vmatpush1.msra.mxu0 0.0
  %404 = vmatprep.subr.mxu0 0.0
  %405 = vmatpush1.msra.mxu0 0.0
  %406 = vmatprep.subr.mxu0 0.0
  %407 = vmatpush1.msra.mxu0 0.0
  %408 = vmatprep.subr.mxu0 0.0
  %409 = vmatpush1.msra.mxu0 0.0
  %410 = vmatprep.subr.mxu0 0.0
  %411 = vmatpush1.msra.mxu0 0.0
  %412 = vmatprep.subr.mxu0 0.0
  %413 = vmatpush1.msra.mxu0 0.0
  %414 = vmatprep.subr.mxu0 0.0
  %415 = vmatpush1.msra.mxu0 0.0
  %416 = vmatprep.mubr.f32.mxu0 0.0
  %417 = vmatmul.mubr.f32.gmra.mrb[0].mxu0 %v350
  %v418 = vpop.f32.mrb[0].mxu0
  %v419 = vadd.f32 0.0, %v418
  %v420 = vpop.f32.mrb[0].mxu0
  %v421 = vadd.f32 0.0, %v420
  %422 = vdwg.mxu0
  %423 = vmatprep.subr.mxu0 %v66
  %424 = vmatpush1.msra.mxu0 %v65
  %425 = vmatprep.subr.mxu0 %v106
  %426 = vmatpush1.msra.mxu0 %v105
  %427 = vmatprep.subr.mxu0 %v146
  %428 = vmatpush1.msra.mxu0 %v145
  %429 = vmatprep.subr.mxu0 %v186
  %430 = vmatpush1.msra.mxu0 %v185
  %431 = vmatprep.subr.mxu0 %v25
  %432 = vmatpush1.msra.mxu0 %v24
  %433 = vmatprep.subr.mxu0 %v226
  %434 = vmatpush1.msra.mxu0 %v225
  %435 = vmatprep.subr.mxu0 %v266
  %436 = vmatpush1.msra.mxu0 %v265
  %437 = vmatprep.subr.mxu0 %v306
  %438 = vmatpush1.msra.mxu0 %v305
  %439 = vmatprep.subr.mxu0 %v346
  %440 = vmatpush1.msra.mxu0 %v345
  %441 = vmatprep.subr.mxu0 0.0
  %442 = vmatpush1.msra.mxu0 0.0
  %443 = vmatprep.subr.mxu0 0.0
  %444 = vmatpush1.msra.mxu0 0.0
  %445 = vmatprep.subr.mxu0 0.0
  %446 = vmatpush1.msra.mxu0 0.0
  %447 = vmatprep.subr.mxu0 0.0
  %448 = vmatpush1.msra.mxu0 0.0
  %449 = vmatprep.subr.mxu0 0.0
  %450 = vmatpush1.msra.mxu0 0.0
  %451 = vmatprep.subr.mxu0 0.0
  %452 = vmatpush1.msra.mxu0 0.0
  %453 = vmatprep.subr.mxu0 0.0
  %454 = vmatpush1.msra.mxu0 0.0
  %455 = vmatprep.subr.mxu0 0.0
  %456 = vmatpush1.msra.mxu0 0.0
  %457 = vmatprep.subr.mxu0 0.0
  %458 = vmatpush1.msra.mxu0 0.0
  %459 = vmatprep.subr.mxu0 0.0
  %460 = vmatpush1.msra.mxu0 0.0
  %461 = vmatprep.subr.mxu0 0.0
  %462 = vmatpush1.msra.mxu0 0.0
  %463 = vmatprep.subr.mxu0 0.0
  %464 = vmatpush1.msra.mxu0 0.0
  %465 = vmatprep.subr.mxu0 0.0
  %466 = vmatpush1.msra.mxu0 0.0
  %467 = vmatprep.subr.mxu0 0.0
  %468 = vmatpush1.msra.mxu0 0.0
  %469 = vmatprep.subr.mxu0 0.0
  %470 = vmatpush1.msra.mxu0 0.0
  %471 = vmatprep.subr.mxu0 0.0
  %472 = vmatpush1.msra.mxu0 0.0
  %473 = vmatprep.subr.mxu0 0.0
  %474 = vmatpush1.msra.mxu0 0.0
  %475 = vmatprep.subr.mxu0 0.0
  %476 = vmatpush1.msra.mxu0 0.0
  %477 = vmatprep.subr.mxu0 0.0
  %478 = vmatpush1.msra.mxu0 0.0
  %479 = vmatprep.subr.mxu0 0.0
  %480 = vmatpush1.msra.mxu0 0.0
  %481 = vmatprep.subr.mxu0 0.0
  %482 = vmatpush1.msra.mxu0 0.0
  %483 = vmatprep.subr.mxu0 0.0
  %484 = vmatpush1.msra.mxu0 0.0
  %485 = vmatprep.subr.mxu0 0.0
  %486 = vmatpush1.msra.mxu0 0.0
  %487 = vmatprep.mubr.f32.mxu0 0.0
  %488 = vmatmul.mubr.f32.gmra.mrb[0].mxu0 %v350
  %v489 = vpop.f32.mrb[0].mxu0
  %v490 = vadd.f32 0.0, %v489
  %v491 = vpop.f32.mrb[0].mxu0
  %v492 = vadd.f32 0.0, %v491
  %493 = vdwg.mxu0
  %494 = vst [vmem:[%s5] sm:$0xff] %v419
  %495 = vst [vmem:[%s5 + $0x8] sm:$0xff] %v421
  %496 = vst [vmem:[%s5 + $0x10] sm:$0xff] %v490
  %497 = vst [vmem:[%s5 + $0x18] sm:$0xff] %v492
  %v498 = vadd.f32 %v419, %v421
  %v499 = vadd.f32 %v498, %v490
  %v500 = vadd.f32 %v499, %v492
  %501 = vadd.xlane.f32.xlu0 %v500
  %v502 = vpop.xlane.xlu0 %501
  %v503 = vmul.f32 %v419, %v419
  %v504 = vmul.f32 %v421, %v421
  %v505 = vmul.f32 %v490, %v490
  %v506 = vmul.f32 %v492, %v492
  %v507 = vadd.f32 %v503, %v504
  %v508 = vadd.f32 %v507, %v505
  %v509 = vadd.f32 %v508, %v506
  %510 = vadd.xlane.f32.xlu0 %v509
  %v511 = vpop.xlane.xlu0 %510
  %vm512 = vcmask 7168
  %v513 = vsel %vm512, %v502, %v511
  %vm514 = vcmask 15360
  %515 = vst.msk [vmem:[%s6] sm:$0xff] %vm514, %v513
  // Predicated region
  $region22: #{double_conv.3} parent=0 // pred_check
    _
  $region23: #{double_conv.3} parent=0 // pred_check_branch
    %517 = sbr.rel (0) target = $region25
  $region24: #{double_conv.3} parent=0 // pred_region
    _
  $region25: #{double_conv.3} parent=0 // pred_fallthru
    _
  // Predicated region
  $region26: #{double_conv.3} parent=0 // pred_check
    _
  $region27: #{double_conv.3} parent=0 // pred_check_branch
    %519 = sbr.rel (0) target = $region29
  $region28: #{double_conv.3} parent=0 // pred_region
    _
  $region29: #{double_conv.3} parent=0 // pred_fallthru
    _
  // Predicated region
  $region30: #{double_conv.3} parent=0 // pred_check
    _
  $region31: #{double_conv.3} parent=0 // pred_check_branch
    %521 = sbr.rel (0) target = $region33
  $region32: #{double_conv.3} parent=0 // pred_region
    _
  $region33: #{double_conv.3} parent=0 // pred_fallthru
    _
  // Predicated region
  $region34: #{double_conv.3} parent=0 // pred_check
    _
  $region35: #{double_conv.3} parent=0 // pred_check_branch
    %523 = sbr.rel (0) target = $region37
  $region36: #{double_conv.3} parent=0 // pred_region
    _
  $region37: #{double_conv.3} parent=0 // pred_fallthru
    _

</llo_original>
